<compile_context>
chip_gen: v6e
topology: v6e:2x2x1
jax: 0.10.0
libtpu: 0.0.40
codegen_flags: <defaults>
</compile_context>

<pallas_src>
import functools
import itertools

import numpy as np
import jax
import jax.numpy as jnp
from jax.experimental import pallas as pl
from jax.experimental.pallas import tpu as pltpu


def _round_up(x, m):
    return ((x + m - 1) // m) * m


def _cdiv(a, b):
    return -(-a // b)


def _as2(v):
    return (v, v) if isinstance(v, int) else tuple(v)


def _vmem_limit_bytes():
    """Generation-conditional scoped-VMEM limit (~half of physical VMEM)."""
    try:
        cap = int(getattr(pltpu.get_tpu_info(), 'vmem_capacity_bytes', 64 * 1024 * 1024))
    except Exception:
        cap = 64 * 1024 * 1024          # conservative (v7x physical VMEM)
    return int(min(max(cap // 2, 32 * 1024 * 1024), 96 * 1024 * 1024))


_VMEM_LIMIT = _vmem_limit_bytes()
_TM_TARGET = 2048                        # target wide-M rows per grid step


# =====================================================================================
# Kernel 1: fused "wide" convolution (stride 1, incl. 1x1) + folded BN bias + ReLU.
#
# The padded NHWC map is flattened to (N, Hp*Wp, Cin).  For tap (i, j) the contribution
# to wide-output position m is flat[m + i*Wp + j] @ W[i*kw+j]; valid outputs live at
# m = oh*Wp + ow with ow < OW, the rest are garbage columns sliced away in glue.
# Grid = (batch, M-chunk): the image stays VMEM-resident across chunks, the output chunk
# writeback is pipelined against the next chunk's compute.
# =====================================================================================

def _wide_conv_kernel(x_ref, w_ref, b_ref, o_ref, *, taps, cin, tm, merge):
    # x_ref: (1, Mflat, Cin) bf16 (full image, resident across m steps)
    # w_ref: (T*Cin, Cout) bf16, b_ref: (1, Cout) f32, o_ref: (1, 1, TM, Cout) bf16
    start = pl.program_id(1) * tm
    if tm % 8 == 0:
        start = pl.multiple_of(start, 8)
    if merge:
        # in-VMEM im2col: one lane-dense matmul instead of T narrow-K matmuls + f32 adds
        a = jnp.concatenate([x_ref[0, pl.ds(start + d, tm), :] for d in taps], axis=-1)
        acc = jnp.dot(a, w_ref[...], preferred_element_type=jnp.float32)
    else:
        acc = None
        for t, d in enumerate(taps):
            a = x_ref[0, pl.ds(start + d, tm), :]
            contrib = jnp.dot(a, w_ref[t * cin:(t + 1) * cin, :],
                              preferred_element_type=jnp.float32)
            acc = contrib if acc is None else acc + contrib
    y = jnp.maximum(acc + b_ref[...], 0.0)
    o_ref[0, 0] = y.astype(o_ref.dtype)


def _conv_stride1(x, p):
    """Conv (stride 1) + folded BN + ReLU, NHWC bf16 in / bf16 out."""
    N, H, W, C = x.shape
    kh, kw = p['ksize']
    ph, pw = p['pad']
    Hp, Wp = H + 2 * ph, W + 2 * pw
    OH, OW = Hp - kh + 1, Wp - kw + 1
    Mw = OH * Wp                                  # "wide" output rows (incl. garbage cols)
    num_m = max(1, _cdiv(Mw, _TM_TARGET))
    tm = _cdiv(Mw, num_m)
    if num_m > 1:
        tm = _round_up(tm, 8)
    max_tap = (kh - 1) * Wp + (kw - 1)
    need = num_m * tm + max_tap                   # flat positions the kernel may touch
    extra_rows = max(0, _cdiv(need - Hp * Wp, Wp))
    xp = x
    if ph or pw or extra_rows:                    # single merged pad (spatial + tail rows)
        xp = jnp.pad(x, ((0, 0), (ph, ph + extra_rows), (pw, pw), (0, 0)))
    flat = xp.reshape(N, (Hp + extra_rows) * Wp, C)
    Mflat = flat.shape[1]
    taps = tuple(i * Wp + j for i in range(kh) for j in range(kw))
    cout = p['w'].shape[-1]
    bias = p['b'].reshape(1, cout)
    merge = (len(taps) > 1) and (C <= 128) and (C * len(taps) <= 1536)

    out = pl.pallas_call(
        functools.partial(_wide_conv_kernel, taps=taps, cin=C, tm=tm, merge=merge),
        out_shape=jax.ShapeDtypeStruct((N, num_m, tm, cout), jnp.bfloat16),
        grid_spec=pltpu.PrefetchScalarGridSpec(
            num_scalar_prefetch=0,
            grid=(N, num_m),
            in_specs=[
                pl.BlockSpec((1, Mflat, C), lambda n, m: (n, 0, 0)),
                pl.BlockSpec(p['w'].shape, lambda n, m: (0, 0)),
                pl.BlockSpec((1, cout), lambda n, m: (0, 0)),
            ],
            out_specs=pl.BlockSpec((1, 1, tm, cout), lambda n, m: (n, m, 0, 0)),
        ),
        compiler_params=pltpu.CompilerParams(
            dimension_semantics=("parallel", "arbitrary"),   # batch split across cores
            vmem_limit_bytes=_VMEM_LIMIT),
    )(flat, p['w'], bias)

    y = out.reshape(N, num_m * tm, cout)
    if num_m * tm != Mw:
        y = y[:, :Mw, :]
    y = y.reshape(N, OH, Wp, cout)
    if OW != Wp:
        y = y[:, :, :OW, :]                       # drop garbage columns
    return y


# =====================================================================================
# Kernel 2: fused chain of stride-1 convs (Conv+BN+ReLU each) -- intermediates in VMEM.
#
# The whole chain uses one row stride Wp = W + 2*sum(pw_i).  Every intermediate extended
# output is masked to its "true + zero ring" region with a precomputed (Mext, 1) mask and
# stored in a VMEM scratch; the next conv runs the same wide-tap trick directly on that
# scratch.  No HBM round trip and no jnp.pad for any intermediate.
# =====================================================================================

@functools.lru_cache(maxsize=None)
def _ring_mask(rows, wp, r0, r1, c0, c1):
    m = np.zeros((rows, wp), np.float32)
    m[r0:r1, c0:c1] = 1.0
    return jnp.asarray(m.reshape(rows * wp, 1), dtype=jnp.bfloat16)


def _chain_kernel(*refs, geo):
    nconv = len(geo)
    x_ref = refs[0]
    idx = 1
    w_refs, b_refs, m_refs = [], [], []
    for i in range(nconv):
        w_refs.append(refs[idx])
        b_refs.append(refs[idx + 1])
        idx += 2
        if i < nconv - 1:
            m_refs.append(refs[idx])
            idx += 1
    o_ref = refs[idx]
    scr_refs = refs[idx + 1:]

    def read(buf, is_x, off, size):
        if is_x:
            return buf[0, off:off + size, :]
        return buf[off:off + size, :]

    cur, cur_is_x = x_ref, True
    for i, (taps, cin, cout, mext, merge) in enumerate(geo):
        if merge:
            a = jnp.concatenate([read(cur, cur_is_x, d, mext) for d in taps], axis=-1)
            acc = jnp.dot(a, w_refs[i][...], preferred_element_type=jnp.float32)
        else:
            acc = None
            for t, d in enumerate(taps):
                a = read(cur, cur_is_x, d, mext)
                contrib = jnp.dot(a, w_refs[i][t * cin:(t + 1) * cin, :],
                                  preferred_element_type=jnp.float32)
                acc = contrib if acc is None else acc + contrib
        y = jnp.maximum(acc + b_refs[i][...], 0.0)
        if i < nconv - 1:
            # zero the ring / garbage columns so they act as padding for the next conv
            y = jnp.where(m_refs[i][...] > 0.5, y, 0.0)
            scr_refs[i][0:mext, :] = y.astype(jnp.bfloat16)
            cur, cur_is_x = scr_refs[i], False
        else:
            o_ref[0] = y.astype(o_ref.dtype)


def conv_chain(x, convs):
    """Fused chain of stride-1 Conv+BN+ReLU layers; all intermediates stay in VMEM."""
    if len(convs) == 1:
        return _conv_stride1(x, convs[0])
    N, H, W, C0 = x.shape
    Ph = sum(c['pad'][0] for c in convs)
    Pw = sum(c['pad'][1] for c in convs)
    Wp = W + 2 * Pw
    rows0 = H + 2 * Ph

    geo = []
    rows_in, cin = rows0, C0
    rh, rw = Ph, Pw
    true_h, true_w = H, W
    for c in convs:
        kh, kw = c['ksize']
        ph, pw = c['pad']
        assert c['stride'] == (1, 1)
        assert rh >= ph and rw >= pw
        rows_out = rows_in - kh + 1
        mext = rows_out * Wp
        true_h = true_h + 2 * ph - kh + 1
        true_w = true_w + 2 * pw - kw + 1
        rh, rw = rh - ph, rw - pw
        taps = tuple(i * Wp + j for i in range(kh) for j in range(kw))
        cout = c['w'].shape[-1]
        geo.append(dict(taps=taps, cin=cin, cout=cout, mext=mext, rows_out=rows_out,
                        ring=(rh, rw), true=(true_h, true_w),
                        merge=(len(taps) > 1 and cin <= 128 and cin * len(taps) <= 1536)))
        rows_in, cin = rows_out, cout
    assert rh == 0 and rw == 0
    OHl, OWl = geo[-1]['true']
    assert geo[-1]['rows_out'] == OHl

    kh1, kw1 = convs[0]['ksize']
    need = geo[0]['mext'] + (kh1 - 1) * Wp + (kw1 - 1)
    extra_rows = max(0, _cdiv(need - rows0 * Wp, Wp))
    xp = jnp.pad(x, ((0, 0), (Ph, Ph + extra_rows), (Pw, Pw), (0, 0)))
    flat = xp.reshape(N, (rows0 + extra_rows) * Wp, C0)
    Mflat = flat.shape[1]

    nconv = len(convs)
    inputs = [flat]
    in_specs = [pl.BlockSpec((1, Mflat, C0), lambda n: (n, 0, 0))]
    for i, (c, g) in enumerate(zip(convs, geo)):
        bias = c['b'].reshape(1, g['cout'])
        inputs += [c['w'], bias]
        in_specs += [pl.BlockSpec(c['w'].shape, lambda n: (0, 0)),
                     pl.BlockSpec((1, g['cout']), lambda n: (0, 0))]
        if i < nconv - 1:
            r0, c0 = g['ring']
            th, tw = g['true']
            mask = _ring_mask(g['rows_out'], Wp, r0, r0 + th, c0, c0 + tw)
            inputs.append(mask)
            in_specs.append(pl.BlockSpec((g['mext'], 1), lambda n: (0, 0)))

    scratch_shapes = []
    for i in range(nconv - 1):
        kw_next = convs[i + 1]['ksize'][1]
        mscr = _round_up(geo[i]['mext'] + kw_next - 1, 8)
        scratch_shapes.append(pltpu.VMEM((mscr, geo[i]['cout']), jnp.bfloat16))

    mw_last, cout_last = geo[-1]['mext'], geo[-1]['cout']
    kgeo = tuple((g['taps'], g['cin'], g['cout'], g['mext'], g['merge']) for g in geo)

    out = pl.pallas_call(
        functools.partial(_chain_kernel, geo=kgeo),
        out_shape=jax.ShapeDtypeStruct((N, mw_last, cout_last), jnp.bfloat16),
        grid_spec=pltpu.PrefetchScalarGridSpec(
            num_scalar_prefetch=0,
            grid=(N,),
            in_specs=in_specs,
            out_specs=pl.BlockSpec((1, mw_last, cout_last), lambda n: (n, 0, 0)),
            scratch_shapes=scratch_shapes),
        compiler_params=pltpu.CompilerParams(
            dimension_semantics=("parallel",),
            vmem_limit_bytes=_VMEM_LIMIT),
    )(*inputs)

    y = out.reshape(N, OHl, Wp, cout_last)
    if OWl != Wp:
        y = y[:, :, :OWl, :]
    return y


# =====================================================================================
# Kernel 3: tiled matmul + bias + ReLU on the MXU (used only for the 5 stride-2 convs,
# via a small XLA im2col).  Adaptive tile sizes minimize M padding.
# =====================================================================================

def _mm_bias_relu_kernel(a_ref, b_ref, bias_ref, o_ref, acc_ref):
    @pl.when(pl.program_id(2) == 0)
    def _():
        acc_ref[...] = jnp.zeros_like(acc_ref)

    acc_ref[...] += jnp.dot(a_ref[...], b_ref[...], preferred_element_type=jnp.float32)

    @pl.when(pl.program_id(2) == pl.num_programs(2) - 1)
    def _():
        y = jnp.maximum(acc_ref[...] + bias_ref[...], 0.0)
        o_ref[...] = y.astype(o_ref.dtype)


def matmul_bias_relu(a, w, b):
    """(M,K)bf16 @ (K,N)bf16 + f32 bias + ReLU -> bf16, tiled on the MXU."""
    M, K = a.shape
    _, Ncol = w.shape
    mchunks = max(1, _cdiv(M, 512))
    tm = _round_up(_cdiv(M, mchunks), 16)          # minimize M padding (e.g. 578 -> 2x304)
    tn = min(256, _round_up(Ncol, 128))
    tk = min(512, _round_up(K, 128))
    Mp, Kp, Np = _round_up(M, tm), _round_up(K, tk), _round_up(Ncol, tn)
    a_p = jnp.pad(a, ((0, Mp - M), (0, Kp - K)))
    w_p = jnp.pad(w, ((0, Kp - K), (0, Np - Ncol)))
    b_p = jnp.pad(b.reshape(1, Ncol), ((0, 0), (0, Np - Ncol)))
    grid = (Mp // tm, Np // tn, Kp // tk)
    out = pl.pallas_call(
        _mm_bias_relu_kernel,
        out_shape=jax.ShapeDtypeStruct((Mp, Np), jnp.bfloat16),
        grid_spec=pltpu.PrefetchScalarGridSpec(
            num_scalar_prefetch=0,
            grid=grid,
            in_specs=[
                pl.BlockSpec((tm, tk), lambda i, j, k: (i, k)),
                pl.BlockSpec((tk, tn), lambda i, j, k: (k, j)),
                pl.BlockSpec((1, tn), lambda i, j, k: (0, j)),
            ],
            out_specs=pl.BlockSpec((tm, tn), lambda i, j, k: (i, j)),
            scratch_shapes=[pltpu.VMEM((tm, tn), jnp.float32)],
        ),
        compiler_params=pltpu.CompilerParams(
            dimension_semantics=("parallel", "parallel", "arbitrary")),
    )(a_p, w_p, b_p)
    return out[:M, :Ncol]


def _conv_im2col(x, p):
    """Stride-2 conv via a small im2col + the tiled matmul kernel (only 5 such convs)."""
    # TODO(synk): strided overlapping windows do not map onto one rectangular BlockSpec,
    # so the 5 stride-2 convs keep a small XLA im2col in front of the Pallas matmul.
    N, H, W, C = x.shape
    kh, kw = p['ksize']
    sh, sw = p['stride']
    ph, pw = p['pad']
    xp = jnp.pad(x, ((0, 0), (ph, ph), (pw, pw), (0, 0))) if (ph or pw) else x
    OH = (H + 2 * ph - kh) // sh + 1
    OW = (W + 2 * pw - kw) // sw + 1
    cols = []
    for i in range(kh):
        for j in range(kw):
            cols.append(xp[:, i:i + sh * (OH - 1) + 1:sh, j:j + sw * (OW - 1) + 1:sw, :])
    patches = jnp.concatenate(cols, axis=-1) if len(cols) > 1 else cols[0]
    patches = patches.reshape(N * OH * OW, kh * kw * C)
    cout = p['w'].shape[-1]
    y = matmul_bias_relu(patches, p['w'], p['b'])
    return y.reshape(N, OH, OW, cout)


def conv_bn_relu(x, p):
    """BasicConv2d (conv + folded BN + ReLU), NHWC bf16."""
    sh, sw = p['stride']
    if sh == 1 and sw == 1:
        return _conv_stride1(x, p)
    return _conv_im2col(x, p)


# =====================================================================================
# Kernel 4: 3x3 stride-1 pad-1 pooling (max / avg with count_include_pad=False).
# Separable reduction (3 H-shifted + 3 W-shifted slices); EUP reciprocal for the divisor.
# =====================================================================================

def _pool_s1_kernel(x_ref, o_ref, *, k, pad, hin, win, mode):
    oh, ow = o_ref.shape[1], o_ref.shape[2]
    part = None
    for i in range(k):                               # reduce along H first
        v = x_ref[0, i:i + oh, :, :]
        if mode == 'avg':
            v = v.astype(jnp.float32)
        if part is None:
            part = v
        elif mode == 'max':
            part = jnp.maximum(part, v)
        else:
            part = part + v
    acc = None
    for j in range(k):                               # then along W
        v = part[:, j:j + ow, :]
        if acc is None:
            acc = v
        elif mode == 'max':
            acc = jnp.maximum(acc, v)
        else:
            acc = acc + v
    if mode == 'avg':
        # per-position valid-element counts (count_include_pad=False), computed in-kernel
        r = jax.lax.broadcasted_iota(jnp.float32, acc.shape, 0)
        c = jax.lax.broadcasted_iota(jnp.float32, acc.shape, 1)
        cnt_r = jnp.minimum(r + float(k - pad), float(hin)) - jnp.maximum(r - float(pad), 0.0)
        cnt_c = jnp.minimum(c + float(k - pad), float(win)) - jnp.maximum(c - float(pad), 0.0)
        acc = acc * pl.reciprocal(cnt_r * cnt_c, approx=True)
    o_ref[0] = acc.astype(o_ref.dtype)


def pool3x3_s1(x, mode):
    """3x3, stride 1, pad 1 pooling on NHWC (mode in {'max','avg'})."""
    N, H, W, C = x.shape
    k, p = 3, 1
    pad_val = -1e30 if mode == 'max' else 0.0
    xp = jnp.pad(x, ((0, 0), (p, p), (p, p), (0, 0)), constant_values=pad_val)
    return pl.pallas_call(
        functools.partial(_pool_s1_kernel, k=k, pad=p, hin=H, win=W, mode=mode),
        out_shape=jax.ShapeDtypeStruct((N, H, W, C), x.dtype),
        grid_spec=pltpu.PrefetchScalarGridSpec(
            num_scalar_prefetch=0,
            grid=(N,),
            in_specs=[pl.BlockSpec((1, H + 2 * p, W + 2 * p, C), lambda n: (n, 0, 0, 0))],
            out_specs=pl.BlockSpec((1, H, W, C), lambda n: (n, 0, 0, 0)),
        ),
        compiler_params=pltpu.CompilerParams(
            dimension_semantics=("parallel",), vmem_limit_bytes=_VMEM_LIMIT),
    )(xp)


def max_pool3x3_s2(x):
    # TODO(synk): stride-2 3x3 max pooling stays an XLA pairwise-max fusion (strided windows
    # do not map onto a single rectangular BlockSpec; no k*k stacked tensor is materialized).
    N, H, W, C = x.shape
    k, s = 3, 2
    OH = (H - k) // s + 1
    OW = (W - k) // s + 1
    out = None
    for i in range(k):
        for j in range(k):
            sl = x[:, i:i + s * (OH - 1) + 1:s, j:j + s * (OW - 1) + 1:s, :]
            out = sl if out is None else jnp.maximum(out, sl)
    return out


# =====================================================================================
# Kernel 5: global average pooling (AdaptiveAvgPool2d((1,1))) -> (N, C) float32.
# =====================================================================================

def _gap_kernel(x_ref, o_ref, *, inv):
    o_ref[...] = jnp.sum(x_ref[...].astype(jnp.float32), axis=1) * inv


def global_avg_pool(x):
    N, H, W, C = x.shape
    HW = H * W
    HWp, Cp = _round_up(HW, 8), _round_up(C, 128)
    xr = x.reshape(N, HW, C)
    if (HWp, Cp) != (HW, C):
        xr = jnp.pad(xr, ((0, 0), (0, HWp - HW), (0, Cp - C)))
    out = pl.pallas_call(
        functools.partial(_gap_kernel, inv=1.0 / HW),
        out_shape=jax.ShapeDtypeStruct((N, Cp), jnp.float32),
    )(xr)
    return out[:, :C]


# =====================================================================================
# Parameters (synthetic, deterministic; BN folded; weights stored as (kh*kw*Cin, Cout) bf16)
# =====================================================================================

_BASE_KEY = jax.random.PRNGKey(42)
_COUNTER = itertools.count()


def make_conv(cin, cout, ksize, stride=1, padding=0):
    ksize, stride, padding = _as2(ksize), _as2(stride), _as2(padding)
    kh, kw = ksize
    key = jax.random.fold_in(_BASE_KEY, next(_COUNTER))
    fan_in = cin * kh * kw
    w = jax.random.normal(key, (cout, cin, kh, kw), jnp.float32) * jnp.sqrt(2.0 / fan_in)
    # Deterministic eval-mode BN params, folded into conv weight/bias (eps = 1e-3).
    gamma = 1.0 + 0.1 * jnp.cos(jnp.arange(cout, dtype=jnp.float32))
    beta = 0.05 * jnp.sin(jnp.arange(cout, dtype=jnp.float32))
    running_mean = jnp.zeros((cout,), jnp.float32)
    running_var = jnp.ones((cout,), jnp.float32)
    scale = gamma * jax.lax.rsqrt(running_var + 1e-3)
    w = w * scale[:, None, None, None]
    b = beta - running_mean * scale
    # (Cout, Cin, KH, KW) -> (KH*KW*Cin, Cout): one (Cin, Cout) slab per tap, tap-major.
    wt = jnp.transpose(w, (2, 3, 1, 0)).reshape(kh * kw * cin, cout).astype(jnp.bfloat16)
    return dict(w=wt, b=b.astype(jnp.float32), ksize=ksize, stride=stride, pad=padding)


def fuse_1x1(convs):
    """Fuse sibling 1x1 convs reading the same input into one matmul (concat along Cout)."""
    fused = dict(
        w=jnp.concatenate([c['w'] for c in convs], axis=-1),
        b=jnp.concatenate([c['b'] for c in convs], axis=-1),
        ksize=(1, 1), stride=(1, 1), pad=(0, 0))
    splits = [c['w'].shape[-1] for c in convs]
    return fused, splits


def _split_channels(y, sizes):
    outs, off = [], 0
    for s in sizes:
        outs.append(y[..., off:off + s])
        off += s
    return outs


def inception_a_params(cin, pool_features):
    fused, splits = fuse_1x1([make_conv(cin, 64, 1),    # branch1x1
                              make_conv(cin, 48, 1),    # branch5x5_1
                              make_conv(cin, 64, 1)])   # branch3x3dbl_1
    return {
        'fused_1x1': fused, 'fused_splits': splits,
        'branch5x5_2': make_conv(48, 64, 5, padding=2),
        'branch3x3dbl_2': make_conv(64, 96, 3, padding=1),
        'branch3x3dbl_3': make_conv(96, 96, 3, padding=1),
        'branch_pool': make_conv(cin, pool_features, 1),
    }


def inception_b_params(cin):
    return {
        'branch3x3': make_conv(cin, 384, 3, stride=2),
        'branch3x3dbl_1': make_conv(cin, 64, 1),
        'branch3x3dbl_2': make_conv(64, 96, 3, padding=1),
        'branch3x3dbl_3': make_conv(96, 96, 3, stride=2),
    }


def inception_c_params(cin, c7):
    fused, splits = fuse_1x1([make_conv(cin, 192, 1),   # branch1x1
                              make_conv(cin, c7, 1),    # branch7x7_1
                              make_conv(cin, c7, 1)])   # branch7x7dbl_1
    return {
        'fused_1x1': fused, 'fused_splits': splits,
        'branch7x7_2': make_conv(c7, c7, (1, 7), padding=(0, 3)),
        'branch7x7_3': make_conv(c7, 192, (7, 1), padding=(3, 0)),
        'branch7x7dbl_2': make_conv(c7, c7, (7, 1), padding=(3, 0)),
        'branch7x7dbl_3': make_conv(c7, c7, (1, 7), padding=(0, 3)),
        'branch7x7dbl_4': make_conv(c7, c7, (7, 1), padding=(3, 0)),
        'branch7x7dbl_5': make_conv(c7, 192, (1, 7), padding=(0, 3)),
        'branch_pool': make_conv(cin, 192, 1),
    }


def inception_d_params(cin):
    fused, splits = fuse_1x1([make_conv(cin, 192, 1),   # branch3x3_1
                              make_conv(cin, 192, 1)])  # branch7x7x3_1
    return {
        'fused_1x1': fused, 'fused_splits': splits,
        'branch3x3_2': make_conv(192, 320, 3, stride=2),
        'branch7x7x3_2': make_conv(192, 192, (1, 7), padding=(0, 3)),
        'branch7x7x3_3': make_conv(192, 192, (7, 1), padding=(3, 0)),
        'branch7x7x3_4': make_conv(192, 192, 3, stride=2),
    }


def inception_e_params(cin):
    fused, splits = fuse_1x1([make_conv(cin, 320, 1),   # branch1x1
                              make_conv(cin, 384, 1),   # branch3x3_1
                              make_conv(cin, 448, 1)])  # branch3x3dbl_1
    return {
        'fused_1x1': fused, 'fused_splits': splits,
        'branch3x3_2a': make_conv(384, 384, (1, 3), padding=(0, 1)),
        'branch3x3_2b': make_conv(384, 384, (3, 1), padding=(1, 0)),
        'branch3x3dbl_2': make_conv(448, 384, 3, padding=1),
        'branch3x3dbl_3a': make_conv(384, 384, (1, 3), padding=(0, 1)),
        'branch3x3dbl_3b': make_conv(384, 384, (3, 1), padding=(1, 0)),
        'branch_pool': make_conv(cin, 192, 1),
    }


def build_params():
    return {
        'Conv2d_1a_3x3': make_conv(3, 32, 3, stride=2),
        'Conv2d_2a_3x3': make_conv(32, 32, 3),
        'Conv2d_2b_3x3': make_conv(32, 64, 3, padding=1),
        'Conv2d_3b_1x1': make_conv(64, 80, 1),
        'Conv2d_4a_3x3': make_conv(80, 192, 3),
        'Mixed_5b': inception_a_params(192, 32),
        'Mixed_5c': inception_a_params(256, 64),
        'Mixed_5d': inception_a_params(288, 64),
        'Mixed_6a': inception_b_params(288),
        'Mixed_6b': inception_c_params(768, 128),
        'Mixed_6c': inception_c_params(768, 160),
        'Mixed_6d': inception_c_params(768, 160),
        'Mixed_6e': inception_c_params(768, 192),
        'Mixed_7a': inception_d_params(768),
        'Mixed_7b': inception_e_params(1280),
        'Mixed_7c': inception_e_params(2048),
    }


# =====================================================================================
# Block forwards
# =====================================================================================

def run_inception_a(x, p):
    f = conv_bn_relu(x, p['fused_1x1'])
    b1, b5, b3 = _split_channels(f, p['fused_splits'])
    b5 = conv_bn_relu(b5, p['branch5x5_2'])
    b3 = conv_chain(b3, [p['branch3x3dbl_2'], p['branch3x3dbl_3']])   # fused in VMEM
    bp = pool3x3_s1(x, 'avg')                      # count_include_pad=False (FID patch)
    bp = conv_bn_relu(bp, p['branch_pool'])
    return jnp.concatenate([b1, b5, b3, bp], axis=-1)


def run_inception_b(x, p):
    b3 = conv_bn_relu(x, p['branch3x3'])
    bd = conv_bn_relu(x, p['branch3x3dbl_1'])
    bd = conv_bn_relu(bd, p['branch3x3dbl_2'])
    bd = conv_bn_relu(bd, p['branch3x3dbl_3'])
    bp = max_pool3x3_s2(x)
    return jnp.concatenate([b3, bd, bp], axis=-1)


def run_inception_c(x, p):
    f = conv_bn_relu(x, p['fused_1x1'])
    b1, b7, bd = _split_channels(f, p['fused_splits'])
    b7 = conv_chain(b7, [p['branch7x7_2'], p['branch7x7_3']])          # fused in VMEM
    bd = conv_chain(bd, [p['branch7x7dbl_2'], p['branch7x7dbl_3'],
                         p['branch7x7dbl_4'], p['branch7x7dbl_5']])    # 4-deep fused chain
    bp = pool3x3_s1(x, 'avg')
    bp = conv_bn_relu(bp, p['branch_pool'])
    return jnp.concatenate([b1, b7, bd, bp], axis=-1)


def run_inception_d(x, p):
    f = conv_bn_relu(x, p['fused_1x1'])
    b3, b7 = _split_channels(f, p['fused_splits'])
    b3 = conv_bn_relu(b3, p['branch3x3_2'])
    b7 = conv_bn_relu(b7, p['branch7x7x3_2'])
    b7 = conv_bn_relu(b7, p['branch7x7x3_3'])
    b7 = conv_bn_relu(b7, p['branch7x7x3_4'])
    bp = max_pool3x3_s2(x)
    return jnp.concatenate([b3, b7, bp], axis=-1)


def run_inception_e(x, p, pool_mode):
    # TODO(synk): the forked 3x3dbl_2 -> {3a, 3b} chain is left unfused (two consumers of
    # one intermediate); maps are 8x8 so the HBM round trip is small.
    f = conv_bn_relu(x, p['fused_1x1'])
    b1, b3, bd = _split_channels(f, p['fused_splits'])
    b3 = jnp.concatenate([conv_bn_relu(b3, p['branch3x3_2a']),
                          conv_bn_relu(b3, p['branch3x3_2b'])], axis=-1)
    bd = conv_bn_relu(bd, p['branch3x3dbl_2'])
    bd = jnp.concatenate([conv_bn_relu(bd, p['branch3x3dbl_3a']),
                          conv_bn_relu(bd, p['branch3x3dbl_3b'])], axis=-1)
    bp = pool3x3_s1(x, pool_mode)                 # 'avg' for Mixed_7b, 'max' for Mixed_7c
    bp = conv_bn_relu(bp, p['branch_pool'])
    return jnp.concatenate([b1, b3, bd, bp], axis=-1)


# =====================================================================================
# Full forward
# =====================================================================================

def inception_v3_forward(x_nchw, params):
    """InceptionV3(output_blocks=[3], resize_input=True, normalize_input=True)."""
    x = jnp.transpose(x_nchw.astype(jnp.float32), (0, 2, 3, 1))   # NCHW -> NHWC
    N = x.shape[0]
    # TODO(synk): bilinear resize (align_corners=False) is jax.image.resize glue, not Pallas.
    x = jax.image.resize(x, (N, 299, 299, 3), method='bilinear')
    x = 2.0 * x - 1.0                                             # (0,1) -> (-1,1)
    x = x.astype(jnp.bfloat16)

    # Block 0
    x = conv_bn_relu(x, params['Conv2d_1a_3x3'])
    x = conv_bn_relu(x, params['Conv2d_2a_3x3'])
    x = conv_bn_relu(x, params['Conv2d_2b_3x3'])
    x = max_pool3x3_s2(x)
    # Block 1
    x = conv_bn_relu(x, params['Conv2d_3b_1x1'])
    x = conv_bn_relu(x, params['Conv2d_4a_3x3'])
    x = max_pool3x3_s2(x)
    # Block 2
    x = run_inception_a(x, params['Mixed_5b'])
    x = run_inception_a(x, params['Mixed_5c'])
    x = run_inception_a(x, params['Mixed_5d'])
    x = run_inception_b(x, params['Mixed_6a'])
    x = run_inception_c(x, params['Mixed_6b'])
    x = run_inception_c(x, params['Mixed_6c'])
    x = run_inception_c(x, params['Mixed_6d'])
    x = run_inception_c(x, params['Mixed_6e'])
    # Block 3
    x = run_inception_d(x, params['Mixed_7a'])
    x = run_inception_e(x, params['Mixed_7b'], pool_mode='avg')
    x = run_inception_e(x, params['Mixed_7c'], pool_mode='max')
    feat = global_avg_pool(x)                                     # (N, 2048) f32
    feat = feat.reshape(N, 2048, 1, 1)                            # NCHW (N, 2048, 1, 1)
    return [feat]                                                 # output_blocks=[3]


if __name__ == "__main__":
    params = build_params()
    key = jax.random.PRNGKey(0)
    x = jax.random.uniform(key, (2, 3, 16, 16), dtype=jnp.float32)  # values in (0,1), Bx3xHxW
    outs = inception_v3_forward(x, params)
    outs = jax.block_until_ready(outs)
    feat = outs[0]
    assert feat.shape == (2, 2048, 1, 1), feat.shape
    assert bool(jnp.all(jnp.isfinite(feat)))
    print("KERNEL_OK")
</pallas_src>

<mosaic_0001>
module attributes {stable_mosaic.version = 11 : i64} {
  func.func @_mm_bias_relu_kernel(%arg0: i32, %arg1: i32, %arg2: i32, %arg3: memref<512x128xbf16, #tpu.memory_space<vmem>>, %arg4: memref<128x128xbf16, #tpu.memory_space<vmem>>, %arg5: memref<1x128xf32, #tpu.memory_space<vmem>>, %arg6: memref<512x128xbf16, #tpu.memory_space<vmem>>, %arg7: memref<512x128xf32, #tpu.memory_space<vmem>>) attributes {dimension_semantics = [#tpu.dimension_semantics<parallel>, #tpu.dimension_semantics<parallel>, #tpu.dimension_semantics<arbitrary>], iteration_bounds = array<i64: 87, 1, 1>, scalar_prefetch = 0 : i64, scratch_operands = 1 : i64, tpu.core_type = #tpu.core_type<tc>, window_params = [{transform_indices = @transform_0, window_bounds = array<i64: 512, 128>}, {transform_indices = @transform_1, window_bounds = array<i64: 128, 128>}, {transform_indices = @transform_2, window_bounds = array<i64: 1, 128>}, {transform_indices = @transform_3, window_bounds = array<i64: 512, 128>}]} {
    %c0_i32 = arith.constant 0 : i32
    %0 = arith.cmpi eq, %arg2, %c0_i32 : i32
    %1 = arith.extui %0 : i1 to i32
    %c0_i32_0 = arith.constant 0 : i32
    %2 = arith.cmpi ne, %1, %c0_i32_0 : i32
    scf.if %2 {
      %cst_10 = arith.constant 0.000000e+00 : f32
      %12 = vector.broadcast %cst_10 : f32 to vector<512x128xf32>
      %c0_11 = arith.constant 0 : index
      %c0_12 = arith.constant 0 : index
      %13 = vector.load %arg7[%c0_11, %c0_12] : memref<512x128xf32, #tpu.memory_space<vmem>>, vector<512x128xf32>
      tpu.vector_store %arg7[%c0_11, %c0_12], %12 {strides = array<i32>} : memref<512x128xf32, #tpu.memory_space<vmem>>, vector<512x128xf32>,
    } else {
    }
    %c0 = arith.constant 0 : index
    %c0_1 = arith.constant 0 : index
    %3 = vector.load %arg7[%c0, %c0_1] : memref<512x128xf32, #tpu.memory_space<vmem>>, vector<512x128xf32>
    %c0_2 = arith.constant 0 : index
    %c0_3 = arith.constant 0 : index
    %4 = vector.load %arg3[%c0_2, %c0_3] : memref<512x128xbf16, #tpu.memory_space<vmem>>, vector<512x128xbf16>
    %c0_4 = arith.constant 0 : index
    %c0_5 = arith.constant 0 : index
    %5 = vector.load %arg4[%c0_4, %c0_5] : memref<128x128xbf16, #tpu.memory_space<vmem>>, vector<128x128xbf16>
    %cst = arith.constant dense<0.000000e+00> : vector<512x128xf32>
    %6 = tpu.matmul %4, %5, %cst {dimension_numbers = #tpu.dot_dimension_numbers<[1], [0], [0], [1], [0, 0, 1, 1], [], []>} : vector<512x128xbf16>, vector<128x128xbf16>, vector<512x128xf32> -> vector<512x128xf32>
    %7 = arith.addf %3, %6 : vector<512x128xf32>
    %c0_6 = arith.constant 0 : index
    %c0_7 = arith.constant 0 : index
    %8 = vector.load %arg7[%c0_6, %c0_7] : memref<512x128xf32, #tpu.memory_space<vmem>>, vector<512x128xf32>
    tpu.vector_store %arg7[%c0_6, %c0_7], %7 {strides = array<i32>} : memref<512x128xf32, #tpu.memory_space<vmem>>, vector<512x128xf32>,
    %c0_i32_8 = arith.constant 0 : i32
    %9 = arith.cmpi eq, %arg2, %c0_i32_8 : i32
    %10 = arith.extui %9 : i1 to i32
    %c0_i32_9 = arith.constant 0 : i32
    %11 = arith.cmpi ne, %10, %c0_i32_9 : i32
    scf.if %11 {
      %c0_10 = arith.constant 0 : index
      %c0_11 = arith.constant 0 : index
      %12 = vector.load %arg7[%c0_10, %c0_11] : memref<512x128xf32, #tpu.memory_space<vmem>>, vector<512x128xf32>
      %c0_12 = arith.constant 0 : index
      %c0_13 = arith.constant 0 : index
      %13 = vector.load %arg5[%c0_12, %c0_13] : memref<1x128xf32, #tpu.memory_space<vmem>>, vector<1x128xf32>
      %14 = vector.broadcast %13 : vector<1x128xf32> to vector<512x128xf32>
      %15 = arith.addf %12, %14 : vector<512x128xf32>
      %cst_14 = arith.constant 0.000000e+00 : f32
      %16 = vector.broadcast %cst_14 : f32 to vector<512x128xf32>
      %17 = arith.maximumf %15, %16 : vector<512x128xf32>
      %18 = arith.truncf %17 : vector<512x128xf32> to vector<512x128xbf16>
      %c0_15 = arith.constant 0 : index
      %c0_16 = arith.constant 0 : index
      %19 = vector.load %arg6[%c0_15, %c0_16] : memref<512x128xbf16, #tpu.memory_space<vmem>>, vector<512x128xbf16>
      tpu.vector_store %arg6[%c0_15, %c0_16], %18 {strides = array<i32>} : memref<512x128xbf16, #tpu.memory_space<vmem>>, vector<512x128xbf16>,
    } else {
    }
    return
  }
  func.func @transform_0(%arg0: i32, %arg1: i32, %arg2: i32) -> (i32, i32) {
    %c0_i32 = arith.constant 0 : i32
    return %arg0, %arg2 : i32, i32
  }
  func.func @transform_1(%arg0: i32, %arg1: i32, %arg2: i32) -> (i32, i32) {
    %c0_i32 = arith.constant 0 : i32
    return %arg2, %arg1 : i32, i32
  }
  func.func @transform_2(%arg0: i32, %arg1: i32, %arg2: i32) -> (i32, i32) {
    %c0_i32 = arith.constant 0 : i32
    %c0_i32_0 = arith.constant 0 : i32
    return %c0_i32, %arg1 : i32, i32
  }
  func.func @transform_3(%arg0: i32, %arg1: i32, %arg2: i32) -> (i32, i32) {
    %c0_i32 = arith.constant 0 : i32
    return %arg0, %arg1 : i32, i32
  }
}

</mosaic_0001>

<llo_original>
// kernel: tpu_custom_call.1
$region0: #{tpu_custom_call.1}
  #allocation0 [shape = 'u32[]', space=smem, size = 0x4, offset = 0x4, fixed_abs, tag = 'smem constant byte address 0x4 - core index']
  #allocation1 [shape = 'u32[144,128]{1,0:T(1,128)}', space=vmem, size = 0x12000, scoped, tag = 'internal scratch']
  #allocation2 [shape = 'f32[512,128]{1,0:T(8,128)}', space=vmem, size = 0x40000, scoped, tag = 'scratch operand']
  %s0 = inlined_call_operand.hbm [shape: bf16[44544,128], index: 0, kind: input, shape index: {}]
  %s1 = inlined_call_operand.hbm [shape: bf16[128,128], index: 1, kind: input, shape index: {}]
  %s2 = inlined_call_operand.hbm [shape: f32[1,128], index: 2, kind: input, shape index: {}]
  %s3 = inlined_call_operand.hbm [shape: bf16[44544,128], index: 3, kind: output, shape index: {}]
  %s4 = sld [smem:[#allocation0]]
  $region65: #{tpu_custom_call.1} parent=0
    _
  %s6 = ssub.s32 1, %s4
  %s7 = scalar_select 0, %s6, %s4
  $region1: #{tpu_custom_call.1} parent=0
    #allocation3 [shape = 'u8[262144]{0}', space=vmem, size = 0x40000, scoped, tag = 'input window, operand 0']
    #allocation4 [shape = 's32[2]{0}', space=sflag, size = 0x8, scoped, tag = 'scoped memory for tpu_custom_call.1']
    #allocation5 [shape = 's32[2]{0}', space=sflag, size = 0x8, scoped, tag = 'scoped memory for tpu_custom_call.1']
    #allocation6 [shape = 'u8[32768]{0}', space=vmem, size = 0x8000, scoped, tag = 'input window, operand 1, single buffered']
    #allocation7 [shape = 's32[1]{0}', space=sflag, size = 0x4, scoped, tag = 'scoped memory for tpu_custom_call.1']
    #allocation8 [shape = 'u8[512]{0}', space=vmem, size = 0x400, scoped, tag = 'input window, operand 2, single buffered']
    #allocation9 [shape = 'u8[262144]{0}', space=vmem, size = 0x40000, scoped, tag = 'output window, operand 0']
    %8 = vsyncpa [#allocation4], 0
    %s9 = scalar_lea.sflag [#allocation4], 1
    %10 = vsyncpa %s9, 0
    %11 = vsyncpa [#allocation7], 0
    %12 = vsyncpa [#allocation5], 0
    %s13 = scalar_lea.sflag [#allocation5], 1
    %14 = vsyncpa %s13, 0
    loop: start=0, step=1, limit=89
    $region2: #{tpu_custom_call.1} parent=1 // loop_pre_header
      _
    $region3: #{tpu_custom_call.1} parent=1 // loop_header
      %s16 = sphi 0, %s20
      %p17 = scmp.ge.s32.totalorder %s16, 89
      %s23 = sphi 0, %s42
      %s24 = sphi 0, %s38
      %s25 = sphi 0, %s34
      %s26 = sphi 0, %s23
      %s27 = sphi 0, %s24
      %s28 = sphi 0, %s25
      %s29 = sphi 0, %s26
      %s30 = sphi 0, %s27
      %s31 = sphi 0, %s28
      %s47 = sphi 0, %s49
      %s50 = sphi 0, %s47
      %s51 = sphi 0, %s50
      %s67 = sphi 0, %s51
      %s75 = sphi 0, %s77
      %s78 = sphi 0, %s75
      %s79 = sphi 0, %s78
      %s95 = sphi 0, %s79
      %s101 = sphi 0, %s103
      %s104 = sphi 0, %s101
      %s105 = sphi 0, %s104
      %s121 = sphi 0, %s105
      %s129 = sphi 0, %s131
      %s132 = sphi 0, %s129
      %s133 = sphi 0, %s132
      %s149 = sphi 0, %s133
    $region4: #{tpu_custom_call.1} parent=1 // loop_header_branch
      %19 = sbr.rel (%p17) target = $region8
    $region5: #{tpu_custom_call.1} parent=1 // loop_body
      %s21 = ssub.s32 %s16, 1
      %s22 = ssub.s32 %s16, 2
      %s32 = sadd.s32 1, %s25
      %p33 = scmp.ge.s32.totalorder %s32, 1
      %s34 = scalar_select %p33, 0, %s32
      %s35 = sadd.s32 1, %s24
      %s36 = scalar_select %p33, %s35, %s24
      %p37 = scmp.ge.s32.totalorder %s36, 1
      %s38 = scalar_select %p37, 0, %s36
      %s39 = sadd.s32 1, %s23
      %s40 = scalar_select %p37, %s39, %s23
      %p41 = scmp.ge.s32.totalorder %s40, 87
      %s42 = scalar_select %p41, 0, %s40
      %s43 = ssub.s32 %s23, %s42
      %s44 = ssub.s32 %s25, %s34
      %s45 = sor.u32 %s43, %s44
      %p46 = scmp.eq.s32.totalorder %s45, 0
      %s48 = sadd.s32 %s47, 1
      %s49 = scalar_select %p46, %s47, %s48
      %p52 = pneg %p46
      %p53 = scmp.eq.s32.totalorder %s16, 86
      %p54 = por %p52, %p53
      %p55 = scmp.ne.s32.totalorder %s47, %s50
      %p56 = scmp.eq.s32.totalorder %s16, 0
      %p57 = por %p55, %p56
      %p58 = scmp.ne.s32.totalorder %s47, %s50
      %p59 = scmp.eq.s32.totalorder %s21, 86
      %p60 = por %p58, %p59
      %p61 = scmp.ne.s32.totalorder %s50, %s51
      %p62 = scmp.eq.s32.totalorder %s21, 0
      %p63 = por %p61, %p62
      %p64 = scmp.ne.s32.totalorder %s50, %s51
      %p65 = scmp.eq.s32.totalorder %s22, 86
      %p66 = por %p64, %p65
      %p68 = scmp.ne.s32.totalorder %s51, %s67
      %p69 = scmp.eq.s32.totalorder %s22, 0
      %p70 = por %p68, %p69
      %s71 = ssub.s32 %s25, %s34
      %s72 = ssub.s32 %s24, %s38
      %s73 = sor.u32 %s71, %s72
      %p74 = scmp.eq.s32.totalorder %s73, 0
      %s76 = sadd.s32 %s75, 1
      %s77 = scalar_select %p74, %s75, %s76
      %p80 = pneg %p74
      %p81 = scmp.eq.s32.totalorder %s16, 86
      %p82 = por %p80, %p81
      %p83 = scmp.ne.s32.totalorder %s75, %s78
      %p84 = scmp.eq.s32.totalorder %s16, 0
      %p85 = por %p83, %p84
      %p86 = scmp.ne.s32.totalorder %s75, %s78
      %p87 = scmp.eq.s32.totalorder %s21, 86
      %p88 = por %p86, %p87
      %p89 = scmp.ne.s32.totalorder %s78, %s79
      %p90 = scmp.eq.s32.totalorder %s21, 0
      %p91 = por %p89, %p90
      %p92 = scmp.ne.s32.totalorder %s78, %s79
      %p93 = scmp.eq.s32.totalorder %s22, 86
      %p94 = por %p92, %p93
      %p96 = scmp.ne.s32.totalorder %s79, %s95
      %p97 = scmp.eq.s32.totalorder %s22, 0
      %p98 = por %p96, %p97
      %s99 = ssub.s32 %s24, %s38
      %p100 = scmp.eq.s32.totalorder %s99, 0
      %s102 = sadd.s32 %s101, 1
      %s103 = scalar_select %p100, %s101, %s102
      %p106 = pneg %p100
      %p107 = scmp.eq.s32.totalorder %s16, 86
      %p108 = por %p106, %p107
      %p109 = scmp.ne.s32.totalorder %s101, %s104
      %p110 = scmp.eq.s32.totalorder %s16, 0
      %p111 = por %p109, %p110
      %p112 = scmp.ne.s32.totalorder %s101, %s104
      %p113 = scmp.eq.s32.totalorder %s21, 86
      %p114 = por %p112, %p113
      %p115 = scmp.ne.s32.totalorder %s104, %s105
      %p116 = scmp.eq.s32.totalorder %s21, 0
      %p117 = por %p115, %p116
      %p118 = scmp.ne.s32.totalorder %s104, %s105
      %p119 = scmp.eq.s32.totalorder %s22, 86
      %p120 = por %p118, %p119
      %p122 = scmp.ne.s32.totalorder %s105, %s121
      %p123 = scmp.eq.s32.totalorder %s22, 0
      %p124 = por %p122, %p123
      %s125 = ssub.s32 %s23, %s42
      %s126 = ssub.s32 %s24, %s38
      %s127 = sor.u32 %s125, %s126
      %p128 = scmp.eq.s32.totalorder %s127, 0
      %s130 = sadd.s32 %s129, 1
      %s131 = scalar_select %p128, %s129, %s130
      %p134 = pneg %p128
      %p135 = scmp.eq.s32.totalorder %s16, 86
      %p136 = por %p134, %p135
      %p137 = scmp.ne.s32.totalorder %s129, %s132
      %p138 = scmp.eq.s32.totalorder %s16, 0
      %p139 = por %p137, %p138
      %p140 = scmp.ne.s32.totalorder %s129, %s132
      %p141 = scmp.eq.s32.totalorder %s21, 86
      %p142 = por %p140, %p141
      %p143 = scmp.ne.s32.totalorder %s132, %s133
      %p144 = scmp.eq.s32.totalorder %s21, 0
      %p145 = por %p143, %p144
      %p146 = scmp.ne.s32.totalorder %s132, %s133
      %p147 = scmp.eq.s32.totalorder %s22, 86
      %p148 = por %p146, %p147
      %p150 = scmp.ne.s32.totalorder %s133, %s149
      %p151 = scmp.eq.s32.totalorder %s22, 0
      %p152 = por %p150, %p151
      %p153 = scmp.le.s32.totalorder 1, %s16
      %p154 = scmp.lt.s32.totalorder %s16, 88
      %p155 = pnand %p153, %p154
      %p156 = pneg %p155
      // Predicated region
      $region9: #{tpu_custom_call.1} parent=5 // pred_check
        _
      $region10: #{tpu_custom_call.1} parent=5 // pred_check_branch
        %158 = sbr.rel (%p155) target = $region12
      $region11: #{tpu_custom_call.1} parent=5 // pred_region
        %s159 = ssub.s32 %s16, 1
        // Predicated region
        $region13: #{tpu_custom_call.1} parent=11 // pred_check
          %p160 = pneg %p91
        $region14: #{tpu_custom_call.1} parent=11 // pred_check_branch
          %162 = sbr.rel (%p160) target = $region16
        $region15: #{tpu_custom_call.1} parent=11 // pred_region
          %s163 = smul.u32 16, %s28
          %s165 = ssub.s32 1024, 1024
          %166 = vsyncadd [#allocation7], %s165
          %s167 = sadd.s32 %s27, %s163
          %s168 = smul.addr %s167, 64
          %s169 = scalar_lea.hbm %s1, %s168
          %s170 = sshll.u32 [#allocation6], 4
          %s171 = int_to_ptr.vmem [resolvable:$true] %s170
          %176 = dma.hbm_to_vmem [thread:$0]  %s169, 1024, %s171, [#allocation7], 64, 64, 4
        $region16: #{tpu_custom_call.1} parent=11 // pred_fallthru
          _
        // Predicated region
        $region17: #{tpu_custom_call.1} parent=11 // pred_check
          %p177 = pneg %p117
        $region18: #{tpu_custom_call.1} parent=11 // pred_check_branch
          %179 = sbr.rel (%p177) target = $region20
        $region19: #{tpu_custom_call.1} parent=11 // pred_region
          %s181 = ssub.s32 16, 16
          %182 = vsyncadd [#allocation7], %s181
          %s183 = smul.addr %s27, 16
          %s184 = scalar_lea.hbm %s2, %s183
          %s186 = sshll.u32 [#allocation8], 4
          %s187 = int_to_ptr.vmem [resolvable:$true] %s186
          %189 = dma.hbm_to_vmem [thread:$0]  %s184, 16, %s187, [#allocation7]
        $region20: #{tpu_custom_call.1} parent=11 // pred_fallthru
          _
      $region12: #{tpu_custom_call.1} parent=5 // pred_fallthru
        _
      %p190 = scmp.lt.s32.totalorder %s16, 87
      // Predicated region
      $region21: #{tpu_custom_call.1} parent=5 // pred_check
        %p191 = pneg %p190
      $region22: #{tpu_custom_call.1} parent=5 // pred_check_branch
        %193 = sbr.rel (%p191) target = $region24
      $region23: #{tpu_custom_call.1} parent=5 // pred_region
        // Predicated region
        $region25: #{tpu_custom_call.1} parent=23 // pred_check
          %p194 = pneg %p57
        $region26: #{tpu_custom_call.1} parent=23 // pred_check_branch
          %196 = sbr.rel (%p194) target = $region28
        $region27: #{tpu_custom_call.1} parent=23 // pred_region
          %s197 = sand.u32 %s47, 1
          %s198 = scalar_lea.sflag [#allocation4], %s197
          %s199 = sand.u32 %s47, 1
          %s200 = smul.addr %s199, 256
          %s201 = scalar_lea.vmem [#allocation3], %s200
          %s202 = smul.u32 64, %s23
          %s204 = ssub.s32 4096, 4096
          %205 = vsyncadd %s198, %s204
          %s206 = sadd.s32 %s25, %s202
          %s207 = smul.addr %s206, 64
          %s208 = scalar_lea.hbm %s0, %s207
          %s209 = sshll.u32 %s201, 4
          %s210 = int_to_ptr.vmem [resolvable:$true] %s209
          %215 = dma.hbm_to_vmem [thread:$0]  %s208, 4096, %s210, %s198, 64, 64, 4
        $region28: #{tpu_custom_call.1} parent=23 // pred_fallthru
          _
      $region24: #{tpu_custom_call.1} parent=5 // pred_fallthru
        _
      %p216 = scmp.le.s32.totalorder 1, %s16
      %p217 = scmp.lt.s32.totalorder %s16, 88
      %p218 = pnand %p216, %p217
      %p219 = pneg %p218
      // Predicated region
      $region29: #{tpu_custom_call.1} parent=5 // pred_check
        _
      $region30: #{tpu_custom_call.1} parent=5 // pred_check_branch
        %221 = sbr.rel (%p218) target = $region32
      $region31: #{tpu_custom_call.1} parent=5 // pred_region
        %s222 = ssub.s32 %s16, 1
        %s223 = sand.u32 %s50, 1
        %s224 = scalar_lea.sflag [#allocation4], %s223
        %s225 = sand.u32 %s50, 1
        %s226 = smul.addr %s225, 256
        %s227 = scalar_lea.vmem [#allocation3], %s226
        // Predicated region
        $region33: #{tpu_custom_call.1} parent=31 // pred_check
          %p228 = pneg %p63
        $region34: #{tpu_custom_call.1} parent=31 // pred_check_branch
          %230 = sbr.rel (%p228) target = $region36
        $region35: #{tpu_custom_call.1} parent=31 // pred_region
          %231 = dma.done %s224, 4096
        $region36: #{tpu_custom_call.1} parent=31 // pred_fallthru
          _
        // Predicated region
        $region37: #{tpu_custom_call.1} parent=31 // pred_check
          %p232 = pneg %p91
        $region38: #{tpu_custom_call.1} parent=31 // pred_check_branch
          %234 = sbr.rel (%p232) target = $region40
        $region39: #{tpu_custom_call.1} parent=31 // pred_region
          %235 = dma.done [#allocation7], 1024
        $region40: #{tpu_custom_call.1} parent=31 // pred_fallthru
          _
        // Predicated region
        $region41: #{tpu_custom_call.1} parent=31 // pred_check
          %p236 = pneg %p117
        $region42: #{tpu_custom_call.1} parent=31 // pred_check_branch
          %238 = sbr.rel (%p236) target = $region44
        $region43: #{tpu_custom_call.1} parent=31 // pred_region
          %239 = dma.done [#allocation7], 16
        $region44: #{tpu_custom_call.1} parent=31 // pred_fallthru
          _
        %s240 = sand.u32 %s50, 1
        %s241 = scalar_lea.sflag [#allocation4], %s240
        %s242 = sand.u32 %s50, 1
        %s243 = smul.addr %s242, 256
        %s244 = scalar_lea.vmem [#allocation3], %s243
        %p245 = pneg %p63
        %p246 = pneg %p60
        %p247 = pneg %p91
        %p248 = pneg %p88
        %p249 = pneg %p117
        %p250 = pneg %p114
        %p251 = pneg %p145
        %p252 = pneg %p142
        %s253 = sand.u32 %s132, 1
        %s254 = scalar_lea.sflag [#allocation5], %s253
        %s255 = sand.u32 %s132, 1
        %s256 = smul.addr %s255, 256
        %s257 = scalar_lea.vmem [#allocation9], %s256
        %s258 = smul.u32 64, %s26
        %s259 = smul.u32 16, %s28
        %s260 = smul.u32 64, %s26
        %p262 = scmp.eq.s32.totalorder %s28, 0
        // Predicated region
        $region45: #{tpu_custom_call.1} parent=31 // pred_check
          %p263 = pneg %p262
        $region46: #{tpu_custom_call.1} parent=31 // pred_check_branch
          %265 = sbr.rel (%p263) target = $region48
        $region47: #{tpu_custom_call.1} parent=31 // pred_region
          %266 = vst [vmem:[#allocation2] sm:$0xff] 0.0
          %267 = vst [vmem:[#allocation2 + $0x8] sm:$0xff] 0.0
          %268 = vst [vmem:[#allocation2 + $0x10] sm:$0xff] 0.0
          %269 = vst [vmem:[#allocation2 + $0x18] sm:$0xff] 0.0
          %270 = vst [vmem:[#allocation2 + $0x20] sm:$0xff] 0.0
          %271 = vst [vmem:[#allocation2 + $0x28] sm:$0xff] 0.0
          %272 = vst [vmem:[#allocation2 + $0x30] sm:$0xff] 0.0
          %273 = vst [vmem:[#allocation2 + $0x38] sm:$0xff] 0.0
          %274 = vst [vmem:[#allocation2 + $0x40] sm:$0xff] 0.0
          %275 = vst [vmem:[#allocation2 + $0x48] sm:$0xff] 0.0
          %276 = vst [vmem:[#allocation2 + $0x50] sm:$0xff] 0.0
          %277 = vst [vmem:[#allocation2 + $0x58] sm:$0xff] 0.0
          %278 = vst [vmem:[#allocation2 + $0x60] sm:$0xff] 0.0
          %279 = vst [vmem:[#allocation2 + $0x68] sm:$0xff] 0.0
          %280 = vst [vmem:[#allocation2 + $0x70] sm:$0xff] 0.0
          %281 = vst [vmem:[#allocation2 + $0x78] sm:$0xff] 0.0
          %282 = vst [vmem:[#allocation2 + $0x80] sm:$0xff] 0.0
          %283 = vst [vmem:[#allocation2 + $0x88] sm:$0xff] 0.0
          %284 = vst [vmem:[#allocation2 + $0x90] sm:$0xff] 0.0
          %285 = vst [vmem:[#allocation2 + $0x98] sm:$0xff] 0.0
          %286 = vst [vmem:[#allocation2 + $0xa0] sm:$0xff] 0.0
          %287 = vst [vmem:[#allocation2 + $0xa8] sm:$0xff] 0.0
          %288 = vst [vmem:[#allocation2 + $0xb0] sm:$0xff] 0.0
          %289 = vst [vmem:[#allocation2 + $0xb8] sm:$0xff] 0.0
          %290 = vst [vmem:[#allocation2 + $0xc0] sm:$0xff] 0.0
          %291 = vst [vmem:[#allocation2 + $0xc8] sm:$0xff] 0.0
          %292 = vst [vmem:[#allocation2 + $0xd0] sm:$0xff] 0.0
          %293 = vst [vmem:[#allocation2 + $0xd8] sm:$0xff] 0.0
          %294 = vst [vmem:[#allocation2 + $0xe0] sm:$0xff] 0.0
          %295 = vst [vmem:[#allocation2 + $0xe8] sm:$0xff] 0.0
          %296 = vst [vmem:[#allocation2 + $0xf0] sm:$0xff] 0.0
          %297 = vst [vmem:[#allocation2 + $0xf8] sm:$0xff] 0.0
          %298 = vst [vmem:[#allocation2 + $0x100] sm:$0xff] 0.0
          %299 = vst [vmem:[#allocation2 + $0x108] sm:$0xff] 0.0
          %300 = vst [vmem:[#allocation2 + $0x110] sm:$0xff] 0.0
          %301 = vst [vmem:[#allocation2 + $0x118] sm:$0xff] 0.0
          %302 = vst [vmem:[#allocation2 + $0x120] sm:$0xff] 0.0
          %303 = vst [vmem:[#allocation2 + $0x128] sm:$0xff] 0.0
          %304 = vst [vmem:[#allocation2 + $0x130] sm:$0xff] 0.0
          %305 = vst [vmem:[#allocation2 + $0x138] sm:$0xff] 0.0
          %306 = vst [vmem:[#allocation2 + $0x140] sm:$0xff] 0.0
          %307 = vst [vmem:[#allocation2 + $0x148] sm:$0xff] 0.0
          %308 = vst [vmem:[#allocation2 + $0x150] sm:$0xff] 0.0
          %309 = vst [vmem:[#allocation2 + $0x158] sm:$0xff] 0.0
          %310 = vst [vmem:[#allocation2 + $0x160] sm:$0xff] 0.0
          %311 = vst [vmem:[#allocation2 + $0x168] sm:$0xff] 0.0
          %312 = vst [vmem:[#allocation2 + $0x170] sm:$0xff] 0.0
          %313 = vst [vmem:[#allocation2 + $0x178] sm:$0xff] 0.0
          %314 = vst [vmem:[#allocation2 + $0x180] sm:$0xff] 0.0
          %315 = vst [vmem:[#allocation2 + $0x188] sm:$0xff] 0.0
          %316 = vst [vmem:[#allocation2 + $0x190] sm:$0xff] 0.0
          %317 = vst [vmem:[#allocation2 + $0x198] sm:$0xff] 0.0
          %318 = vst [vmem:[#allocation2 + $0x1a0] sm:$0xff] 0.0
          %319 = vst [vmem:[#allocation2 + $0x1a8] sm:$0xff] 0.0
          %320 = vst [vmem:[#allocation2 + $0x1b0] sm:$0xff] 0.0
          %321 = vst [vmem:[#allocation2 + $0x1b8] sm:$0xff] 0.0
          %322 = vst [vmem:[#allocation2 + $0x1c0] sm:$0xff] 0.0
          %323 = vst [vmem:[#allocation2 + $0x1c8] sm:$0xff] 0.0
          %324 = vst [vmem:[#allocation2 + $0x1d0] sm:$0xff] 0.0
          %325 = vst [vmem:[#allocation2 + $0x1d8] sm:$0xff] 0.0
          %326 = vst [vmem:[#allocation2 + $0x1e0] sm:$0xff] 0.0
          %327 = vst [vmem:[#allocation2 + $0x1e8] sm:$0xff] 0.0
          %328 = vst [vmem:[#allocation2 + $0x1f0] sm:$0xff] 0.0
          %329 = vst [vmem:[#allocation2 + $0x1f8] sm:$0xff] 0.0
        $region48: #{tpu_custom_call.1} parent=31 // pred_fallthru
          _
        %v330 = vld [vmem:[#allocation2] sm:$0xff]
        %v331 = vld [vmem:[#allocation2 + $0x8] sm:$0xff]
        %v332 = vld [vmem:[#allocation2 + $0x10] sm:$0xff]
        %v333 = vld [vmem:[#allocation2 + $0x18] sm:$0xff]
        %v334 = vld [vmem:[#allocation2 + $0x20] sm:$0xff]
        %v335 = vld [vmem:[#allocation2 + $0x28] sm:$0xff]
        %v336 = vld [vmem:[#allocation2 + $0x30] sm:$0xff]
        %v337 = vld [vmem:[#allocation2 + $0x38] sm:$0xff]
        %v338 = vld [vmem:[#allocation2 + $0x40] sm:$0xff]
        %v339 = vld [vmem:[#allocation2 + $0x48] sm:$0xff]
        %v340 = vld [vmem:[#allocation2 + $0x50] sm:$0xff]
        %v341 = vld [vmem:[#allocation2 + $0x58] sm:$0xff]
        %v342 = vld [vmem:[#allocation2 + $0x60] sm:$0xff]
        %v343 = vld [vmem:[#allocation2 + $0x68] sm:$0xff]
        %v344 = vld [vmem:[#allocation2 + $0x70] sm:$0xff]
        %v345 = vld [vmem:[#allocation2 + $0x78] sm:$0xff]
        %v346 = vld [vmem:[#allocation2 + $0x80] sm:$0xff]
        %v347 = vld [vmem:[#allocation2 + $0x88] sm:$0xff]
        %v348 = vld [vmem:[#allocation2 + $0x90] sm:$0xff]
        %v349 = vld [vmem:[#allocation2 + $0x98] sm:$0xff]
        %v350 = vld [vmem:[#allocation2 + $0xa0] sm:$0xff]
        %v351 = vld [vmem:[#allocation2 + $0xa8] sm:$0xff]
        %v352 = vld [vmem:[#allocation2 + $0xb0] sm:$0xff]
        %v353 = vld [vmem:[#allocation2 + $0xb8] sm:$0xff]
        %v354 = vld [vmem:[#allocation2 + $0xc0] sm:$0xff]
        %v355 = vld [vmem:[#allocation2 + $0xc8] sm:$0xff]
        %v356 = vld [vmem:[#allocation2 + $0xd0] sm:$0xff]
        %v357 = vld [vmem:[#allocation2 + $0xd8] sm:$0xff]
        %v358 = vld [vmem:[#allocation2 + $0xe0] sm:$0xff]
        %v359 = vld [vmem:[#allocation2 + $0xe8] sm:$0xff]
        %v360 = vld [vmem:[#allocation2 + $0xf0] sm:$0xff]
        %v361 = vld [vmem:[#allocation2 + $0xf8] sm:$0xff]
        %v362 = vld [vmem:[#allocation2 + $0x100] sm:$0xff]
        %v363 = vld [vmem:[#allocation2 + $0x108] sm:$0xff]
        %v364 = vld [vmem:[#allocation2 + $0x110] sm:$0xff]
        %v365 = vld [vmem:[#allocation2 + $0x118] sm:$0xff]
        %v366 = vld [vmem:[#allocation2 + $0x120] sm:$0xff]
        %v367 = vld [vmem:[#allocation2 + $0x128] sm:$0xff]
        %v368 = vld [vmem:[#allocation2 + $0x130] sm:$0xff]
        %v369 = vld [vmem:[#allocation2 + $0x138] sm:$0xff]
        %v370 = vld [vmem:[#allocation2 + $0x140] sm:$0xff]
        %v371 = vld [vmem:[#allocation2 + $0x148] sm:$0xff]
        %v372 = vld [vmem:[#allocation2 + $0x150] sm:$0xff]
        %v373 = vld [vmem:[#allocation2 + $0x158] sm:$0xff]
        %v374 = vld [vmem:[#allocation2 + $0x160] sm:$0xff]
        %v375 = vld [vmem:[#allocation2 + $0x168] sm:$0xff]
        %v376 = vld [vmem:[#allocation2 + $0x170] sm:$0xff]
        %v377 = vld [vmem:[#allocation2 + $0x178] sm:$0xff]
        %v378 = vld [vmem:[#allocation2 + $0x180] sm:$0xff]
        %v379 = vld [vmem:[#allocation2 + $0x188] sm:$0xff]
        %v380 = vld [vmem:[#allocation2 + $0x190] sm:$0xff]
        %v381 = vld [vmem:[#allocation2 + $0x198] sm:$0xff]
        %v382 = vld [vmem:[#allocation2 + $0x1a0] sm:$0xff]
        %v383 = vld [vmem:[#allocation2 + $0x1a8] sm:$0xff]
        %v384 = vld [vmem:[#allocation2 + $0x1b0] sm:$0xff]
        %v385 = vld [vmem:[#allocation2 + $0x1b8] sm:$0xff]
        %v386 = vld [vmem:[#allocation2 + $0x1c0] sm:$0xff]
        %v387 = vld [vmem:[#allocation2 + $0x1c8] sm:$0xff]
        %v388 = vld [vmem:[#allocation2 + $0x1d0] sm:$0xff]
        %v389 = vld [vmem:[#allocation2 + $0x1d8] sm:$0xff]
        %v390 = vld [vmem:[#allocation2 + $0x1e0] sm:$0xff]
        %v391 = vld [vmem:[#allocation2 + $0x1e8] sm:$0xff]
        %v392 = vld [vmem:[#allocation2 + $0x1f0] sm:$0xff]
        %v393 = vld [vmem:[#allocation2 + $0x1f8] sm:$0xff]
        %v394 = vld [vmem:[%s227] sm:$0xf]
        %v395 = vld [vmem:[%s227 + $0x4] sm:$0xf]
        %v396 = vld [vmem:[%s227 + $0x8] sm:$0xf]
        %v397 = vld [vmem:[%s227 + $0xc] sm:$0xf]
        %v398 = vld [vmem:[%s227 + $0x10] sm:$0xf]
        %v399 = vld [vmem:[%s227 + $0x14] sm:$0xf]
        %v400 = vld [vmem:[%s227 + $0x18] sm:$0xf]
        %v401 = vld [vmem:[%s227 + $0x1c] sm:$0xf]
        %v402 = vld [vmem:[%s227 + $0x20] sm:$0xf]
        %v403 = vld [vmem:[%s227 + $0x24] sm:$0xf]
        %v404 = vld [vmem:[%s227 + $0x28] sm:$0xf]
        %v405 = vld [vmem:[%s227 + $0x2c] sm:$0xf]
        %v406 = vld [vmem:[%s227 + $0x30] sm:$0xf]
        %v407 = vld [vmem:[%s227 + $0x34] sm:$0xf]
        %v408 = vld [vmem:[%s227 + $0x38] sm:$0xf]
        %v409 = vld [vmem:[%s227 + $0x3c] sm:$0xf]
        %v410 = vld [vmem:[%s227 + $0x40] sm:$0xf]
        %v411 = vld [vmem:[%s227 + $0x44] sm:$0xf]
        %v412 = vld [vmem:[%s227 + $0x48] sm:$0xf]
        %v413 = vld [vmem:[%s227 + $0x4c] sm:$0xf]
        %v414 = vld [vmem:[%s227 + $0x50] sm:$0xf]
        %v415 = vld [vmem:[%s227 + $0x54] sm:$0xf]
        %v416 = vld [vmem:[%s227 + $0x58] sm:$0xf]
        %v417 = vld [vmem:[%s227 + $0x5c] sm:$0xf]
        %v418 = vld [vmem:[%s227 + $0x60] sm:$0xf]
        %v419 = vld [vmem:[%s227 + $0x64] sm:$0xf]
        %v420 = vld [vmem:[%s227 + $0x68] sm:$0xf]
        %v421 = vld [vmem:[%s227 + $0x6c] sm:$0xf]
        %v422 = vld [vmem:[%s227 + $0x70] sm:$0xf]
        %v423 = vld [vmem:[%s227 + $0x74] sm:$0xf]
        %v424 = vld [vmem:[%s227 + $0x78] sm:$0xf]
        %v425 = vld [vmem:[%s227 + $0x7c] sm:$0xf]
        %v426 = vld [vmem:[%s227 + $0x80] sm:$0xf]
        %v427 = vld [vmem:[%s227 + $0x84] sm:$0xf]
        %v428 = vld [vmem:[%s227 + $0x88] sm:$0xf]
        %v429 = vld [vmem:[%s227 + $0x8c] sm:$0xf]
        %v430 = vld [vmem:[%s227 + $0x90] sm:$0xf]
        %v431 = vld [vmem:[%s227 + $0x94] sm:$0xf]
        %v432 = vld [vmem:[%s227 + $0x98] sm:$0xf]
        %v433 = vld [vmem:[%s227 + $0x9c] sm:$0xf]
        %v434 = vld [vmem:[%s227 + $0xa0] sm:$0xf]
        %v435 = vld [vmem:[%s227 + $0xa4] sm:$0xf]
        %v436 = vld [vmem:[%s227 + $0xa8] sm:$0xf]
        %v437 = vld [vmem:[%s227 + $0xac] sm:$0xf]
        %v438 = vld [vmem:[%s227 + $0xb0] sm:$0xf]
        %v439 = vld [vmem:[%s227 + $0xb4] sm:$0xf]
        %v440 = vld [vmem:[%s227 + $0xb8] sm:$0xf]
        %v441 = vld [vmem:[%s227 + $0xbc] sm:$0xf]
        %v442 = vld [vmem:[%s227 + $0xc0] sm:$0xf]
        %v443 = vld [vmem:[%s227 + $0xc4] sm:$0xf]
        %v444 = vld [vmem:[%s227 + $0xc8] sm:$0xf]
        %v445 = vld [vmem:[%s227 + $0xcc] sm:$0xf]
        %v446 = vld [vmem:[%s227 + $0xd0] sm:$0xf]
        %v447 = vld [vmem:[%s227 + $0xd4] sm:$0xf]
        %v448 = vld [vmem:[%s227 + $0xd8] sm:$0xf]
        %v449 = vld [vmem:[%s227 + $0xdc] sm:$0xf]
        %v450 = vld [vmem:[%s227 + $0xe0] sm:$0xf]
        %v451 = vld [vmem:[%s227 + $0xe4] sm:$0xf]
        %v452 = vld [vmem:[%s227 + $0xe8] sm:$0xf]
        %v453 = vld [vmem:[%s227 + $0xec] sm:$0xf]
        %v454 = vld [vmem:[%s227 + $0xf0] sm:$0xf]
        %v455 = vld [vmem:[%s227 + $0xf4] sm:$0xf]
        %v456 = vld [vmem:[%s227 + $0xf8] sm:$0xf]
        %v457 = vld [vmem:[%s227 + $0xfc] sm:$0xf]
        %v458 = vld [vmem:[#allocation6] sm:$0xf]
        %v459 = vld [vmem:[#allocation6 + $0x4] sm:$0xf]
        %v460 = vld [vmem:[#allocation6 + $0x8] sm:$0xf]
        %v461 = vld [vmem:[#allocation6 + $0xc] sm:$0xf]
        %v462 = vld [vmem:[#allocation6 + $0x10] sm:$0xf]
        %v463 = vld [vmem:[#allocation6 + $0x14] sm:$0xf]
        %v464 = vld [vmem:[#allocation6 + $0x18] sm:$0xf]
        %v465 = vld [vmem:[#allocation6 + $0x1c] sm:$0xf]
        %v466 = vld [vmem:[#allocation6 + $0x20] sm:$0xf]
        %v467 = vld [vmem:[#allocation6 + $0x24] sm:$0xf]
        %v468 = vld [vmem:[#allocation6 + $0x28] sm:$0xf]
        %v469 = vld [vmem:[#allocation6 + $0x2c] sm:$0xf]
        %v470 = vld [vmem:[#allocation6 + $0x30] sm:$0xf]
        %v471 = vld [vmem:[#allocation6 + $0x34] sm:$0xf]
        %v472 = vld [vmem:[#allocation6 + $0x38] sm:$0xf]
        %v473 = vld [vmem:[#allocation6 + $0x3c] sm:$0xf]
        %v538 = vunpack.c.l.b16 %v394
        %v539 = vunpack.c.l.b16 %v395
        %v540 = vunpack.c.l.b16 %v396
        %v541 = vunpack.c.l.b16 %v397
        %v542 = vunpack.c.l.b16 %v398
        %v543 = vunpack.c.l.b16 %v399
        %v544 = vunpack.c.l.b16 %v400
        %v545 = vunpack.c.l.b16 %v401
        %v546 = vunpack.c.l.b16 %v402
        %v547 = vunpack.c.l.b16 %v403
        %v548 = vunpack.c.l.b16 %v404
        %v549 = vunpack.c.l.b16 %v405
        %v550 = vunpack.c.l.b16 %v406
        %v551 = vunpack.c.l.b16 %v407
        %v552 = vunpack.c.l.b16 %v408
        %v553 = vunpack.c.l.b16 %v409
        %v554 = vunpack.c.l.b16 %v410
        %v555 = vunpack.c.l.b16 %v411
        %v556 = vunpack.c.l.b16 %v412
        %v557 = vunpack.c.l.b16 %v413
        %v558 = vunpack.c.l.b16 %v414
        %v559 = vunpack.c.l.b16 %v415
        %v560 = vunpack.c.l.b16 %v416
        %v561 = vunpack.c.l.b16 %v417
        %v562 = vunpack.c.l.b16 %v418
        %v563 = vunpack.c.l.b16 %v419
        %v564 = vunpack.c.l.b16 %v420
        %v565 = vunpack.c.l.b16 %v421
        %v566 = vunpack.c.l.b16 %v422
        %v567 = vunpack.c.l.b16 %v423
        %v568 = vunpack.c.l.b16 %v424
        %v569 = vunpack.c.l.b16 %v425
        %v570 = vunpack.c.l.b16 %v426
        %v571 = vunpack.c.l.b16 %v427
        %v572 = vunpack.c.l.b16 %v428
        %v573 = vunpack.c.l.b16 %v429
        %v574 = vunpack.c.l.b16 %v430
        %v575 = vunpack.c.l.b16 %v431
        %v576 = vunpack.c.l.b16 %v432
        %v577 = vunpack.c.l.b16 %v433
        %v578 = vunpack.c.l.b16 %v434
        %v579 = vunpack.c.l.b16 %v435
        %v580 = vunpack.c.l.b16 %v436
        %v581 = vunpack.c.l.b16 %v437
        %v582 = vunpack.c.l.b16 %v438
        %v583 = vunpack.c.l.b16 %v439
        %v584 = vunpack.c.l.b16 %v440
        %v585 = vunpack.c.l.b16 %v441
        %v586 = vunpack.c.l.b16 %v442
        %v587 = vunpack.c.l.b16 %v443
        %v588 = vunpack.c.l.b16 %v444
        %v589 = vunpack.c.l.b16 %v445
        %v590 = vunpack.c.l.b16 %v446
        %v591 = vunpack.c.l.b16 %v447
        %v592 = vunpack.c.l.b16 %v448
        %v593 = vunpack.c.l.b16 %v449
        %v594 = vunpack.c.l.b16 %v450
        %v595 = vunpack.c.l.b16 %v451
        %v596 = vunpack.c.l.b16 %v452
        %v597 = vunpack.c.l.b16 %v453
        %v598 = vunpack.c.l.b16 %v454
        %v599 = vunpack.c.l.b16 %v455
        %v600 = vunpack.c.l.b16 %v456
        %v601 = vunpack.c.l.b16 %v457
        %v602 = vpack.c.b16 %v539, %v538
        %v603 = vpack.c.b16 %v541, %v540
        %v604 = vpack.c.b16 %v543, %v542
        %v605 = vpack.c.b16 %v545, %v544
        %v606 = vpack.c.b16 %v547, %v546
        %v607 = vpack.c.b16 %v549, %v548
        %v608 = vpack.c.b16 %v551, %v550
        %v609 = vpack.c.b16 %v553, %v552
        %v610 = vpack.c.b16 %v555, %v554
        %v611 = vpack.c.b16 %v557, %v556
        %v612 = vpack.c.b16 %v559, %v558
        %v613 = vpack.c.b16 %v561, %v560
        %v614 = vpack.c.b16 %v563, %v562
        %v615 = vpack.c.b16 %v565, %v564
        %v616 = vpack.c.b16 %v567, %v566
        %v617 = vpack.c.b16 %v569, %v568
        %v618 = vpack.c.b16 %v571, %v570
        %v619 = vpack.c.b16 %v573, %v572
        %v620 = vpack.c.b16 %v575, %v574
        %v621 = vpack.c.b16 %v577, %v576
        %v622 = vpack.c.b16 %v579, %v578
        %v623 = vpack.c.b16 %v581, %v580
        %v624 = vpack.c.b16 %v583, %v582
        %v625 = vpack.c.b16 %v585, %v584
        %v626 = vpack.c.b16 %v587, %v586
        %v627 = vpack.c.b16 %v589, %v588
        %v628 = vpack.c.b16 %v591, %v590
        %v629 = vpack.c.b16 %v593, %v592
        %v630 = vpack.c.b16 %v595, %v594
        %v631 = vpack.c.b16 %v597, %v596
        %v632 = vpack.c.b16 %v599, %v598
        %v633 = vpack.c.b16 %v601, %v600
        %v682 = vunpack.c.l.b16 %v458
        %v683 = vunpack.c.l.b16 %v459
        %v684 = vunpack.c.l.b16 %v460
        %v685 = vunpack.c.l.b16 %v461
        %v686 = vunpack.c.l.b16 %v462
        %v687 = vunpack.c.l.b16 %v463
        %v688 = vunpack.c.l.b16 %v464
        %v689 = vunpack.c.l.b16 %v465
        %v690 = vunpack.c.l.b16 %v466
        %v691 = vunpack.c.l.b16 %v467
        %v692 = vunpack.c.l.b16 %v468
        %v693 = vunpack.c.l.b16 %v469
        %v694 = vunpack.c.l.b16 %v470
        %v695 = vunpack.c.l.b16 %v471
        %v696 = vunpack.c.l.b16 %v472
        %v697 = vunpack.c.l.b16 %v473
        %v698 = vpack.c.b16 %v683, %v682
        %v699 = vpack.c.b16 %v685, %v684
        %v700 = vpack.c.b16 %v687, %v686
        %v701 = vpack.c.b16 %v689, %v688
        %v702 = vpack.c.b16 %v691, %v690
        %v703 = vpack.c.b16 %v693, %v692
        %v704 = vpack.c.b16 %v695, %v694
        %v705 = vpack.c.b16 %v697, %v696
        %714 = vmatprep.subr.bf16.mxu0 0
        %715 = vmatpush1.bf16.msra.mxu0 %v705
        %716 = vmatprep.subr.bf16.mxu0 0
        %717 = vmatpush1.bf16.msra.mxu0 %v704
        %718 = vmatprep.subr.bf16.mxu0 0
        %719 = vmatpush1.bf16.msra.mxu0 %v703
        %720 = vmatprep.subr.bf16.mxu0 0
        %721 = vmatpush1.bf16.msra.mxu0 %v702
        %722 = vmatprep.subr.bf16.mxu0 0
        %723 = vmatpush1.bf16.msra.mxu0 %v701
        %724 = vmatprep.subr.bf16.mxu0 0
        %725 = vmatpush1.bf16.msra.mxu0 %v700
        %726 = vmatprep.subr.bf16.mxu0 0
        %727 = vmatpush1.bf16.msra.mxu0 %v699
        %728 = vmatprep.subr.bf16.mxu0 0
        %729 = vmatpush1.bf16.msra.mxu0 %v698
        %730 = vmatprep.subr.bf16.mxu0 0
        %731 = vmatpush2.bf16.msra.mxu0 0
        %732 = vmatprep.subr.bf16.mxu0 0
        %733 = vmatpush2.bf16.msra.mxu0 0
        %734 = vmatprep.subr.bf16.mxu0 0
        %735 = vmatpush2.bf16.msra.mxu0 0
        %736 = vmatprep.subr.bf16.mxu0 0
        %737 = vmatpush2.bf16.msra.mxu0 0
        %738 = vmatprep.subr.bf16.mxu0 0
        %739 = vmatpush2.bf16.msra.mxu0 0
        %740 = vmatprep.subr.bf16.mxu0 0
        %741 = vmatpush2.bf16.msra.mxu0 0
        %742 = vmatprep.subr.bf16.mxu0 0
        %743 = vmatpush2.bf16.msra.mxu0 0
        %744 = vmatprep.subr.bf16.mxu0 0
        %745 = vmatpush2.bf16.msra.mxu0 0
        %746 = vmatprep.mubr.bf16.mxu0 0
        %747 = vmatmul.mubr.bf16.gmra.mxu0 %v602
        %v748 = vpop.f32.mrf.mxu0
        %v749 = vadd.f32 0.0, %v748
        %v750 = vpop.f32.mrf.mxu0
        %v751 = vpop.f32.mrf.mxu0
        %v752 = vadd.f32 0.0, %v751
        %v753 = vpop.f32.mrf.mxu0
        %754 = vmatprep.mubr.bf16.mxu0 0
        %755 = vmatmul.mubr.bf16.gmra.mxu0 %v603
        %v756 = vpop.f32.mrf.mxu0
        %v757 = vadd.f32 0.0, %v756
        %v758 = vpop.f32.mrf.mxu0
        %v759 = vpop.f32.mrf.mxu0
        %v760 = vadd.f32 0.0, %v759
        %v761 = vpop.f32.mrf.mxu0
        %762 = vmatprep.mubr.bf16.mxu0 0
        %763 = vmatmul.mubr.bf16.gmra.mxu0 %v604
        %v764 = vpop.f32.mrf.mxu0
        %v765 = vadd.f32 0.0, %v764
        %v766 = vpop.f32.mrf.mxu0
        %v767 = vpop.f32.mrf.mxu0
        %v768 = vadd.f32 0.0, %v767
        %v769 = vpop.f32.mrf.mxu0
        %770 = vmatprep.mubr.bf16.mxu0 0
        %771 = vmatmul.mubr.bf16.gmra.mxu0 %v605
        %v772 = vpop.f32.mrf.mxu0
        %v773 = vadd.f32 0.0, %v772
        %v774 = vpop.f32.mrf.mxu0
        %v775 = vpop.f32.mrf.mxu0
        %v776 = vadd.f32 0.0, %v775
        %v777 = vpop.f32.mrf.mxu0
        %778 = vmatprep.mubr.bf16.mxu0 0
        %779 = vmatmul.mubr.bf16.gmra.mxu0 %v606
        %v780 = vpop.f32.mrf.mxu0
        %v781 = vadd.f32 0.0, %v780
        %v782 = vpop.f32.mrf.mxu0
        %v783 = vpop.f32.mrf.mxu0
        %v784 = vadd.f32 0.0, %v783
        %v785 = vpop.f32.mrf.mxu0
        %786 = vmatprep.mubr.bf16.mxu0 0
        %787 = vmatmul.mubr.bf16.gmra.mxu0 %v607
        %v788 = vpop.f32.mrf.mxu0
        %v789 = vadd.f32 0.0, %v788
        %v790 = vpop.f32.mrf.mxu0
        %v791 = vpop.f32.mrf.mxu0
        %v792 = vadd.f32 0.0, %v791
        %v793 = vpop.f32.mrf.mxu0
        %794 = vmatprep.mubr.bf16.mxu0 0
        %795 = vmatmul.mubr.bf16.gmra.mxu0 %v608
        %v796 = vpop.f32.mrf.mxu0
        %v797 = vadd.f32 0.0, %v796
        %v798 = vpop.f32.mrf.mxu0
        %v799 = vpop.f32.mrf.mxu0
        %v800 = vadd.f32 0.0, %v799
        %v801 = vpop.f32.mrf.mxu0
        %802 = vmatprep.mubr.bf16.mxu0 0
        %803 = vmatmul.mubr.bf16.gmra.mxu0 %v609
        %v804 = vpop.f32.mrf.mxu0
        %v805 = vadd.f32 0.0, %v804
        %v806 = vpop.f32.mrf.mxu0
        %v807 = vpop.f32.mrf.mxu0
        %v808 = vadd.f32 0.0, %v807
        %v809 = vpop.f32.mrf.mxu0
        %810 = vmatprep.mubr.bf16.mxu0 0
        %811 = vmatmul.mubr.bf16.gmra.mxu0 %v610
        %v812 = vpop.f32.mrf.mxu0
        %v813 = vadd.f32 0.0, %v812
        %v814 = vpop.f32.mrf.mxu0
        %v815 = vpop.f32.mrf.mxu0
        %v816 = vadd.f32 0.0, %v815
        %v817 = vpop.f32.mrf.mxu0
        %818 = vmatprep.mubr.bf16.mxu0 0
        %819 = vmatmul.mubr.bf16.gmra.mxu0 %v611
        %v820 = vpop.f32.mrf.mxu0
        %v821 = vadd.f32 0.0, %v820
        %v822 = vpop.f32.mrf.mxu0
        %v823 = vpop.f32.mrf.mxu0
        %v824 = vadd.f32 0.0, %v823
        %v825 = vpop.f32.mrf.mxu0
        %826 = vmatprep.mubr.bf16.mxu0 0
        %827 = vmatmul.mubr.bf16.gmra.mxu0 %v612
        %v828 = vpop.f32.mrf.mxu0
        %v829 = vadd.f32 0.0, %v828
        %v830 = vpop.f32.mrf.mxu0
        %v831 = vpop.f32.mrf.mxu0
        %v832 = vadd.f32 0.0, %v831
        %v833 = vpop.f32.mrf.mxu0
        %834 = vmatprep.mubr.bf16.mxu0 0
        %835 = vmatmul.mubr.bf16.gmra.mxu0 %v613
        %v836 = vpop.f32.mrf.mxu0
        %v837 = vadd.f32 0.0, %v836
        %v838 = vpop.f32.mrf.mxu0
        %v839 = vpop.f32.mrf.mxu0
        %v840 = vadd.f32 0.0, %v839
        %v841 = vpop.f32.mrf.mxu0
        %842 = vmatprep.mubr.bf16.mxu0 0
        %843 = vmatmul.mubr.bf16.gmra.mxu0 %v614
        %v844 = vpop.f32.mrf.mxu0
        %v845 = vadd.f32 0.0, %v844
        %v846 = vpop.f32.mrf.mxu0
        %v847 = vpop.f32.mrf.mxu0
        %v848 = vadd.f32 0.0, %v847
        %v849 = vpop.f32.mrf.mxu0
        %850 = vmatprep.mubr.bf16.mxu0 0
        %851 = vmatmul.mubr.bf16.gmra.mxu0 %v615
        %v852 = vpop.f32.mrf.mxu0
        %v853 = vadd.f32 0.0, %v852
        %v854 = vpop.f32.mrf.mxu0
        %v855 = vpop.f32.mrf.mxu0
        %v856 = vadd.f32 0.0, %v855
        %v857 = vpop.f32.mrf.mxu0
        %858 = vmatprep.mubr.bf16.mxu0 0
        %859 = vmatmul.mubr.bf16.gmra.mxu0 %v616
        %v860 = vpop.f32.mrf.mxu0
        %v861 = vadd.f32 0.0, %v860
        %v862 = vpop.f32.mrf.mxu0
        %v863 = vpop.f32.mrf.mxu0
        %v864 = vadd.f32 0.0, %v863
        %v865 = vpop.f32.mrf.mxu0
        %866 = vmatprep.mubr.bf16.mxu0 0
        %867 = vmatmul.mubr.bf16.gmra.mxu0 %v617
        %v868 = vpop.f32.mrf.mxu0
        %v869 = vadd.f32 0.0, %v868
        %v870 = vpop.f32.mrf.mxu0
        %v871 = vpop.f32.mrf.mxu0
        %v872 = vadd.f32 0.0, %v871
        %v873 = vpop.f32.mrf.mxu0
        %874 = vmatprep.mubr.bf16.mxu0 0
        %875 = vmatmul.mubr.bf16.gmra.mxu0 %v618
        %v876 = vpop.f32.mrf.mxu0
        %v877 = vadd.f32 0.0, %v876
        %v878 = vpop.f32.mrf.mxu0
        %v879 = vpop.f32.mrf.mxu0
        %v880 = vadd.f32 0.0, %v879
        %v881 = vpop.f32.mrf.mxu0
        %882 = vmatprep.mubr.bf16.mxu0 0
        %883 = vmatmul.mubr.bf16.gmra.mxu0 %v619
        %v884 = vpop.f32.mrf.mxu0
        %v885 = vadd.f32 0.0, %v884
        %v886 = vpop.f32.mrf.mxu0
        %v887 = vpop.f32.mrf.mxu0
        %v888 = vadd.f32 0.0, %v887
        %v889 = vpop.f32.mrf.mxu0
        %890 = vmatprep.mubr.bf16.mxu0 0
        %891 = vmatmul.mubr.bf16.gmra.mxu0 %v620
        %v892 = vpop.f32.mrf.mxu0
        %v893 = vadd.f32 0.0, %v892
        %v894 = vpop.f32.mrf.mxu0
        %v895 = vpop.f32.mrf.mxu0
        %v896 = vadd.f32 0.0, %v895
        %v897 = vpop.f32.mrf.mxu0
        %898 = vmatprep.mubr.bf16.mxu0 0
        %899 = vmatmul.mubr.bf16.gmra.mxu0 %v621
        %v900 = vpop.f32.mrf.mxu0
        %v901 = vadd.f32 0.0, %v900
        %v902 = vpop.f32.mrf.mxu0
        %v903 = vpop.f32.mrf.mxu0
        %v904 = vadd.f32 0.0, %v903
        %v905 = vpop.f32.mrf.mxu0
        %906 = vmatprep.mubr.bf16.mxu0 0
        %907 = vmatmul.mubr.bf16.gmra.mxu0 %v622
        %v908 = vpop.f32.mrf.mxu0
        %v909 = vadd.f32 0.0, %v908
        %v910 = vpop.f32.mrf.mxu0
        %v911 = vpop.f32.mrf.mxu0
        %v912 = vadd.f32 0.0, %v911
        %v913 = vpop.f32.mrf.mxu0
        %914 = vmatprep.mubr.bf16.mxu0 0
        %915 = vmatmul.mubr.bf16.gmra.mxu0 %v623
        %v916 = vpop.f32.mrf.mxu0
        %v917 = vadd.f32 0.0, %v916
        %v918 = vpop.f32.mrf.mxu0
        %v919 = vpop.f32.mrf.mxu0
        %v920 = vadd.f32 0.0, %v919
        %v921 = vpop.f32.mrf.mxu0
        %922 = vmatprep.mubr.bf16.mxu0 0
        %923 = vmatmul.mubr.bf16.gmra.mxu0 %v624
        %v924 = vpop.f32.mrf.mxu0
        %v925 = vadd.f32 0.0, %v924
        %v926 = vpop.f32.mrf.mxu0
        %v927 = vpop.f32.mrf.mxu0
        %v928 = vadd.f32 0.0, %v927
        %v929 = vpop.f32.mrf.mxu0
        %930 = vmatprep.mubr.bf16.mxu0 0
        %931 = vmatmul.mubr.bf16.gmra.mxu0 %v625
        %v932 = vpop.f32.mrf.mxu0
        %v933 = vadd.f32 0.0, %v932
        %v934 = vpop.f32.mrf.mxu0
        %v935 = vpop.f32.mrf.mxu0
        %v936 = vadd.f32 0.0, %v935
        %v937 = vpop.f32.mrf.mxu0
        %938 = vmatprep.mubr.bf16.mxu0 0
        %939 = vmatmul.mubr.bf16.gmra.mxu0 %v626
        %v940 = vpop.f32.mrf.mxu0
        %v941 = vadd.f32 0.0, %v940
        %v942 = vpop.f32.mrf.mxu0
        %v943 = vpop.f32.mrf.mxu0
        %v944 = vadd.f32 0.0, %v943
        %v945 = vpop.f32.mrf.mxu0
        %946 = vmatprep.mubr.bf16.mxu0 0
        %947 = vmatmul.mubr.bf16.gmra.mxu0 %v627
        %v948 = vpop.f32.mrf.mxu0
        %v949 = vadd.f32 0.0, %v948
        %v950 = vpop.f32.mrf.mxu0
        %v951 = vpop.f32.mrf.mxu0
        %v952 = vadd.f32 0.0, %v951
        %v953 = vpop.f32.mrf.mxu0
        %954 = vmatprep.mubr.bf16.mxu0 0
        %955 = vmatmul.mubr.bf16.gmra.mxu0 %v628
        %v956 = vpop.f32.mrf.mxu0
        %v957 = vadd.f32 0.0, %v956
        %v958 = vpop.f32.mrf.mxu0
        %v959 = vpop.f32.mrf.mxu0
        %v960 = vadd.f32 0.0, %v959
        %v961 = vpop.f32.mrf.mxu0
        %962 = vmatprep.mubr.bf16.mxu0 0
        %963 = vmatmul.mubr.bf16.gmra.mxu0 %v629
        %v964 = vpop.f32.mrf.mxu0
        %v965 = vadd.f32 0.0, %v964
        %v966 = vpop.f32.mrf.mxu0
        %v967 = vpop.f32.mrf.mxu0
        %v968 = vadd.f32 0.0, %v967
        %v969 = vpop.f32.mrf.mxu0
        %970 = vmatprep.mubr.bf16.mxu0 0
        %971 = vmatmul.mubr.bf16.gmra.mxu0 %v630
        %v972 = vpop.f32.mrf.mxu0
        %v973 = vadd.f32 0.0, %v972
        %v974 = vpop.f32.mrf.mxu0
        %v975 = vpop.f32.mrf.mxu0
        %v976 = vadd.f32 0.0, %v975
        %v977 = vpop.f32.mrf.mxu0
        %978 = vmatprep.mubr.bf16.mxu0 0
        %979 = vmatmul.mubr.bf16.gmra.mxu0 %v631
        %v980 = vpop.f32.mrf.mxu0
        %v981 = vadd.f32 0.0, %v980
        %v982 = vpop.f32.mrf.mxu0
        %v983 = vpop.f32.mrf.mxu0
        %v984 = vadd.f32 0.0, %v983
        %v985 = vpop.f32.mrf.mxu0
        %986 = vmatprep.mubr.bf16.mxu0 0
        %987 = vmatmul.mubr.bf16.gmra.mxu0 %v632
        %v988 = vpop.f32.mrf.mxu0
        %v989 = vadd.f32 0.0, %v988
        %v990 = vpop.f32.mrf.mxu0
        %v991 = vpop.f32.mrf.mxu0
        %v992 = vadd.f32 0.0, %v991
        %v993 = vpop.f32.mrf.mxu0
        %994 = vmatprep.mubr.bf16.mxu0 0
        %995 = vmatmul.mubr.bf16.gmra.mxu0 %v633
        %v996 = vpop.f32.mrf.mxu0
        %v997 = vadd.f32 0.0, %v996
        %v998 = vpop.f32.mrf.mxu0
        %v999 = vpop.f32.mrf.mxu0
        %v1000 = vadd.f32 0.0, %v999
        %v1001 = vpop.f32.mrf.mxu0
        %1002 = vdwg.mxu0
        %v1003 = vadd.f32 %v330, %v749
        %v1004 = vadd.f32 %v331, %v752
        %v1005 = vadd.f32 %v332, %v757
        %v1006 = vadd.f32 %v333, %v760
        %v1007 = vadd.f32 %v334, %v765
        %v1008 = vadd.f32 %v335, %v768
        %v1009 = vadd.f32 %v336, %v773
        %v1010 = vadd.f32 %v337, %v776
        %v1011 = vadd.f32 %v338, %v781
        %v1012 = vadd.f32 %v339, %v784
        %v1013 = vadd.f32 %v340, %v789
        %v1014 = vadd.f32 %v341, %v792
        %v1015 = vadd.f32 %v342, %v797
        %v1016 = vadd.f32 %v343, %v800
        %v1017 = vadd.f32 %v344, %v805
        %v1018 = vadd.f32 %v345, %v808
        %v1019 = vadd.f32 %v346, %v813
        %v1020 = vadd.f32 %v347, %v816
        %v1021 = vadd.f32 %v348, %v821
        %v1022 = vadd.f32 %v349, %v824
        %v1023 = vadd.f32 %v350, %v829
        %v1024 = vadd.f32 %v351, %v832
        %v1025 = vadd.f32 %v352, %v837
        %v1026 = vadd.f32 %v353, %v840
        %v1027 = vadd.f32 %v354, %v845
        %v1028 = vadd.f32 %v355, %v848
        %v1029 = vadd.f32 %v356, %v853
        %v1030 = vadd.f32 %v357, %v856
        %v1031 = vadd.f32 %v358, %v861
        %v1032 = vadd.f32 %v359, %v864
        %v1033 = vadd.f32 %v360, %v869
        %v1034 = vadd.f32 %v361, %v872
        %v1035 = vadd.f32 %v362, %v877
        %v1036 = vadd.f32 %v363, %v880
        %v1037 = vadd.f32 %v364, %v885
        %v1038 = vadd.f32 %v365, %v888
        %v1039 = vadd.f32 %v366, %v893
        %v1040 = vadd.f32 %v367, %v896
        %v1041 = vadd.f32 %v368, %v901
        %v1042 = vadd.f32 %v369, %v904
        %v1043 = vadd.f32 %v370, %v909
        %v1044 = vadd.f32 %v371, %v912
        %v1045 = vadd.f32 %v372, %v917
        %v1046 = vadd.f32 %v373, %v920
        %v1047 = vadd.f32 %v374, %v925
        %v1048 = vadd.f32 %v375, %v928
        %v1049 = vadd.f32 %v376, %v933
        %v1050 = vadd.f32 %v377, %v936
        %v1051 = vadd.f32 %v378, %v941
        %v1052 = vadd.f32 %v379, %v944
        %v1053 = vadd.f32 %v380, %v949
        %v1054 = vadd.f32 %v381, %v952
        %v1055 = vadd.f32 %v382, %v957
        %v1056 = vadd.f32 %v383, %v960
        %v1057 = vadd.f32 %v384, %v965
        %v1058 = vadd.f32 %v385, %v968
        %v1059 = vadd.f32 %v386, %v973
        %v1060 = vadd.f32 %v387, %v976
        %v1061 = vadd.f32 %v388, %v981
        %v1062 = vadd.f32 %v389, %v984
        %v1063 = vadd.f32 %v390, %v989
        %v1064 = vadd.f32 %v391, %v992
        %v1065 = vadd.f32 %v392, %v997
        %v1066 = vadd.f32 %v393, %v1000
        %1067 = vst [vmem:[#allocation2] sm:$0xff] %v1003
        %1068 = vst [vmem:[#allocation2 + $0x8] sm:$0xff] %v1004
        %1069 = vst [vmem:[#allocation2 + $0x10] sm:$0xff] %v1005
        %1070 = vst [vmem:[#allocation2 + $0x18] sm:$0xff] %v1006
        %1071 = vst [vmem:[#allocation2 + $0x20] sm:$0xff] %v1007
        %1072 = vst [vmem:[#allocation2 + $0x28] sm:$0xff] %v1008
        %1073 = vst [vmem:[#allocation2 + $0x30] sm:$0xff] %v1009
        %1074 = vst [vmem:[#allocation2 + $0x38] sm:$0xff] %v1010
        %1075 = vst [vmem:[#allocation2 + $0x40] sm:$0xff] %v1011
        %1076 = vst [vmem:[#allocation2 + $0x48] sm:$0xff] %v1012
        %1077 = vst [vmem:[#allocation2 + $0x50] sm:$0xff] %v1013
        %1078 = vst [vmem:[#allocation2 + $0x58] sm:$0xff] %v1014
        %1079 = vst [vmem:[#allocation2 + $0x60] sm:$0xff] %v1015
        %1080 = vst [vmem:[#allocation2 + $0x68] sm:$0xff] %v1016
        %1081 = vst [vmem:[#allocation2 + $0x70] sm:$0xff] %v1017
        %1082 = vst [vmem:[#allocation2 + $0x78] sm:$0xff] %v1018
        %1083 = vst [vmem:[#allocation2 + $0x80] sm:$0xff] %v1019
        %1084 = vst [vmem:[#allocation2 + $0x88] sm:$0xff] %v1020
        %1085 = vst [vmem:[#allocation2 + $0x90] sm:$0xff] %v1021
        %1086 = vst [vmem:[#allocation2 + $0x98] sm:$0xff] %v1022
        %1087 = vst [vmem:[#allocation2 + $0xa0] sm:$0xff] %v1023
        %1088 = vst [vmem:[#allocation2 + $0xa8] sm:$0xff] %v1024
        %1089 = vst [vmem:[#allocation2 + $0xb0] sm:$0xff] %v1025
        %1090 = vst [vmem:[#allocation2 + $0xb8] sm:$0xff] %v1026
        %1091 = vst [vmem:[#allocation2 + $0xc0] sm:$0xff] %v1027
        %1092 = vst [vmem:[#allocation2 + $0xc8] sm:$0xff] %v1028
        %1093 = vst [vmem:[#allocation2 + $0xd0] sm:$0xff] %v1029
        %1094 = vst [vmem:[#allocation2 + $0xd8] sm:$0xff] %v1030
        %1095 = vst [vmem:[#allocation2 + $0xe0] sm:$0xff] %v1031
        %1096 = vst [vmem:[#allocation2 + $0xe8] sm:$0xff] %v1032
        %1097 = vst [vmem:[#allocation2 + $0xf0] sm:$0xff] %v1033
        %1098 = vst [vmem:[#allocation2 + $0xf8] sm:$0xff] %v1034
        %1099 = vst [vmem:[#allocation2 + $0x100] sm:$0xff] %v1035
        %1100 = vst [vmem:[#allocation2 + $0x108] sm:$0xff] %v1036
        %1101 = vst [vmem:[#allocation2 + $0x110] sm:$0xff] %v1037
        %1102 = vst [vmem:[#allocation2 + $0x118] sm:$0xff] %v1038
        %1103 = vst [vmem:[#allocation2 + $0x120] sm:$0xff] %v1039
        %1104 = vst [vmem:[#allocation2 + $0x128] sm:$0xff] %v1040
        %1105 = vst [vmem:[#allocation2 + $0x130] sm:$0xff] %v1041
        %1106 = vst [vmem:[#allocation2 + $0x138] sm:$0xff] %v1042
        %1107 = vst [vmem:[#allocation2 + $0x140] sm:$0xff] %v1043
        %1108 = vst [vmem:[#allocation2 + $0x148] sm:$0xff] %v1044
        %1109 = vst [vmem:[#allocation2 + $0x150] sm:$0xff] %v1045
        %1110 = vst [vmem:[#allocation2 + $0x158] sm:$0xff] %v1046
        %1111 = vst [vmem:[#allocation2 + $0x160] sm:$0xff] %v1047
        %1112 = vst [vmem:[#allocation2 + $0x168] sm:$0xff] %v1048
        %1113 = vst [vmem:[#allocation2 + $0x170] sm:$0xff] %v1049
        %1114 = vst [vmem:[#allocation2 + $0x178] sm:$0xff] %v1050
        %1115 = vst [vmem:[#allocation2 + $0x180] sm:$0xff] %v1051
        %1116 = vst [vmem:[#allocation2 + $0x188] sm:$0xff] %v1052
        %1117 = vst [vmem:[#allocation2 + $0x190] sm:$0xff] %v1053
        %1118 = vst [vmem:[#allocation2 + $0x198] sm:$0xff] %v1054
        %1119 = vst [vmem:[#allocation2 + $0x1a0] sm:$0xff] %v1055
        %1120 = vst [vmem:[#allocation2 + $0x1a8] sm:$0xff] %v1056
        %1121 = vst [vmem:[#allocation2 + $0x1b0] sm:$0xff] %v1057
        %1122 = vst [vmem:[#allocation2 + $0x1b8] sm:$0xff] %v1058
        %1123 = vst [vmem:[#allocation2 + $0x1c0] sm:$0xff] %v1059
        %1124 = vst [vmem:[#allocation2 + $0x1c8] sm:$0xff] %v1060
        %1125 = vst [vmem:[#allocation2 + $0x1d0] sm:$0xff] %v1061
        %1126 = vst [vmem:[#allocation2 + $0x1d8] sm:$0xff] %v1062
        %1127 = vst [vmem:[#allocation2 + $0x1e0] sm:$0xff] %v1063
        %1128 = vst [vmem:[#allocation2 + $0x1e8] sm:$0xff] %v1064
        %1129 = vst [vmem:[#allocation2 + $0x1f0] sm:$0xff] %v1065
        %1130 = vst [vmem:[#allocation2 + $0x1f8] sm:$0xff] %v1066
        // Predicated region
        $region49: #{tpu_custom_call.1} parent=31 // pred_check
          %p1131 = pneg %p262
        $region50: #{tpu_custom_call.1} parent=31 // pred_check_branch
          %1133 = sbr.rel (%p1131) target = $region52
        $region51: #{tpu_custom_call.1} parent=31 // pred_region
          %v1134 = vld [vmem:[#allocation2] sm:$0xff]
          %v1135 = vld [vmem:[#allocation2 + $0x8] sm:$0xff]
          %v1136 = vld [vmem:[#allocation2 + $0x10] sm:$0xff]
          %v1137 = vld [vmem:[#allocation2 + $0x18] sm:$0xff]
          %v1138 = vld [vmem:[#allocation2 + $0x20] sm:$0xff]
          %v1139 = vld [vmem:[#allocation2 + $0x28] sm:$0xff]
          %v1140 = vld [vmem:[#allocation2 + $0x30] sm:$0xff]
          %v1141 = vld [vmem:[#allocation2 + $0x38] sm:$0xff]
          %v1142 = vld [vmem:[#allocation2 + $0x40] sm:$0xff]
          %v1143 = vld [vmem:[#allocation2 + $0x48] sm:$0xff]
          %v1144 = vld [vmem:[#allocation2 + $0x50] sm:$0xff]
          %v1145 = vld [vmem:[#allocation2 + $0x58] sm:$0xff]
          %v1146 = vld [vmem:[#allocation2 + $0x60] sm:$0xff]
          %v1147 = vld [vmem:[#allocation2 + $0x68] sm:$0xff]
          %v1148 = vld [vmem:[#allocation2 + $0x70] sm:$0xff]
          %v1149 = vld [vmem:[#allocation2 + $0x78] sm:$0xff]
          %v1150 = vld [vmem:[#allocation2 + $0x80] sm:$0xff]
          %v1151 = vld [vmem:[#allocation2 + $0x88] sm:$0xff]
          %v1152 = vld [vmem:[#allocation2 + $0x90] sm:$0xff]
          %v1153 = vld [vmem:[#allocation2 + $0x98] sm:$0xff]
          %v1154 = vld [vmem:[#allocation2 + $0xa0] sm:$0xff]
          %v1155 = vld [vmem:[#allocation2 + $0xa8] sm:$0xff]
          %v1156 = vld [vmem:[#allocation2 + $0xb0] sm:$0xff]
          %v1157 = vld [vmem:[#allocation2 + $0xb8] sm:$0xff]
          %v1158 = vld [vmem:[#allocation2 + $0xc0] sm:$0xff]
          %v1159 = vld [vmem:[#allocation2 + $0xc8] sm:$0xff]
          %v1160 = vld [vmem:[#allocation2 + $0xd0] sm:$0xff]
          %v1161 = vld [vmem:[#allocation2 + $0xd8] sm:$0xff]
          %v1162 = vld [vmem:[#allocation2 + $0xe0] sm:$0xff]
          %v1163 = vld [vmem:[#allocation2 + $0xe8] sm:$0xff]
          %v1164 = vld [vmem:[#allocation2 + $0xf0] sm:$0xff]
          %v1165 = vld [vmem:[#allocation2 + $0xf8] sm:$0xff]
          %v1166 = vld [vmem:[#allocation2 + $0x100] sm:$0xff]
          %v1167 = vld [vmem:[#allocation2 + $0x108] sm:$0xff]
          %v1168 = vld [vmem:[#allocation2 + $0x110] sm:$0xff]
          %v1169 = vld [vmem:[#allocation2 + $0x118] sm:$0xff]
          %v1170 = vld [vmem:[#allocation2 + $0x120] sm:$0xff]
          %v1171 = vld [vmem:[#allocation2 + $0x128] sm:$0xff]
          %v1172 = vld [vmem:[#allocation2 + $0x130] sm:$0xff]
          %v1173 = vld [vmem:[#allocation2 + $0x138] sm:$0xff]
          %v1174 = vld [vmem:[#allocation2 + $0x140] sm:$0xff]
          %v1175 = vld [vmem:[#allocation2 + $0x148] sm:$0xff]
          %v1176 = vld [vmem:[#allocation2 + $0x150] sm:$0xff]
          %v1177 = vld [vmem:[#allocation2 + $0x158] sm:$0xff]
          %v1178 = vld [vmem:[#allocation2 + $0x160] sm:$0xff]
          %v1179 = vld [vmem:[#allocation2 + $0x168] sm:$0xff]
          %v1180 = vld [vmem:[#allocation2 + $0x170] sm:$0xff]
          %v1181 = vld [vmem:[#allocation2 + $0x178] sm:$0xff]
          %v1182 = vld [vmem:[#allocation2 + $0x180] sm:$0xff]
          %v1183 = vld [vmem:[#allocation2 + $0x188] sm:$0xff]
          %v1184 = vld [vmem:[#allocation2 + $0x190] sm:$0xff]
          %v1185 = vld [vmem:[#allocation2 + $0x198] sm:$0xff]
          %v1186 = vld [vmem:[#allocation2 + $0x1a0] sm:$0xff]
          %v1187 = vld [vmem:[#allocation2 + $0x1a8] sm:$0xff]
          %v1188 = vld [vmem:[#allocation2 + $0x1b0] sm:$0xff]
          %v1189 = vld [vmem:[#allocation2 + $0x1b8] sm:$0xff]
          %v1190 = vld [vmem:[#allocation2 + $0x1c0] sm:$0xff]
          %v1191 = vld [vmem:[#allocation2 + $0x1c8] sm:$0xff]
          %v1192 = vld [vmem:[#allocation2 + $0x1d0] sm:$0xff]
          %v1193 = vld [vmem:[#allocation2 + $0x1d8] sm:$0xff]
          %v1194 = vld [vmem:[#allocation2 + $0x1e0] sm:$0xff]
          %v1195 = vld [vmem:[#allocation2 + $0x1e8] sm:$0xff]
          %v1196 = vld [vmem:[#allocation2 + $0x1f0] sm:$0xff]
          %v1197 = vld [vmem:[#allocation2 + $0x1f8] sm:$0xff]
          %v1198 = vld [vmem:[#allocation8] sm:$0x1]
          %v1200 = vlaneseq
          %v1201 = vshrl.u32 %v1200, 7
          %v1202 = vsub.s32 0, %v1201
          %v1203 = vrot.slane %v1198, %v1202
          %v1205 = vadd.f32 %v1134, %v1203
          %v1206 = vadd.f32 %v1135, %v1203
          %v1207 = vadd.f32 %v1136, %v1203
          %v1208 = vadd.f32 %v1137, %v1203
          %v1209 = vadd.f32 %v1138, %v1203
          %v1210 = vadd.f32 %v1139, %v1203
          %v1211 = vadd.f32 %v1140, %v1203
          %v1212 = vadd.f32 %v1141, %v1203
          %v1213 = vadd.f32 %v1142, %v1203
          %v1214 = vadd.f32 %v1143, %v1203
          %v1215 = vadd.f32 %v1144, %v1203
          %v1216 = vadd.f32 %v1145, %v1203
          %v1217 = vadd.f32 %v1146, %v1203
          %v1218 = vadd.f32 %v1147, %v1203
          %v1219 = vadd.f32 %v1148, %v1203
          %v1220 = vadd.f32 %v1149, %v1203
          %v1221 = vadd.f32 %v1150, %v1203
          %v1222 = vadd.f32 %v1151, %v1203
          %v1223 = vadd.f32 %v1152, %v1203
          %v1224 = vadd.f32 %v1153, %v1203
          %v1225 = vadd.f32 %v1154, %v1203
          %v1226 = vadd.f32 %v1155, %v1203
          %v1227 = vadd.f32 %v1156, %v1203
          %v1228 = vadd.f32 %v1157, %v1203
          %v1229 = vadd.f32 %v1158, %v1203
          %v1230 = vadd.f32 %v1159, %v1203
          %v1231 = vadd.f32 %v1160, %v1203
          %v1232 = vadd.f32 %v1161, %v1203
          %v1233 = vadd.f32 %v1162, %v1203
          %v1234 = vadd.f32 %v1163, %v1203
          %v1235 = vadd.f32 %v1164, %v1203
          %v1236 = vadd.f32 %v1165, %v1203
          %v1237 = vadd.f32 %v1166, %v1203
          %v1238 = vadd.f32 %v1167, %v1203
          %v1239 = vadd.f32 %v1168, %v1203
          %v1240 = vadd.f32 %v1169, %v1203
          %v1241 = vadd.f32 %v1170, %v1203
          %v1242 = vadd.f32 %v1171, %v1203
          %v1243 = vadd.f32 %v1172, %v1203
          %v1244 = vadd.f32 %v1173, %v1203
          %v1245 = vadd.f32 %v1174, %v1203
          %v1246 = vadd.f32 %v1175, %v1203
          %v1247 = vadd.f32 %v1176, %v1203
          %v1248 = vadd.f32 %v1177, %v1203
          %v1249 = vadd.f32 %v1178, %v1203
          %v1250 = vadd.f32 %v1179, %v1203
          %v1251 = vadd.f32 %v1180, %v1203
          %v1252 = vadd.f32 %v1181, %v1203
          %v1253 = vadd.f32 %v1182, %v1203
          %v1254 = vadd.f32 %v1183, %v1203
          %v1255 = vadd.f32 %v1184, %v1203
          %v1256 = vadd.f32 %v1185, %v1203
          %v1257 = vadd.f32 %v1186, %v1203
          %v1258 = vadd.f32 %v1187, %v1203
          %v1259 = vadd.f32 %v1188, %v1203
          %v1260 = vadd.f32 %v1189, %v1203
          %v1261 = vadd.f32 %v1190, %v1203
          %v1262 = vadd.f32 %v1191, %v1203
          %v1263 = vadd.f32 %v1192, %v1203
          %v1264 = vadd.f32 %v1193, %v1203
          %v1265 = vadd.f32 %v1194, %v1203
          %v1266 = vadd.f32 %v1195, %v1203
          %v1267 = vadd.f32 %v1196, %v1203
          %v1268 = vadd.f32 %v1197, %v1203
          %v1269 = vmax.f32 %v1205, 0.0
          %v1270 = vmax.f32 %v1206, 0.0
          %v1271 = vmax.f32 %v1207, 0.0
          %v1272 = vmax.f32 %v1208, 0.0
          %v1273 = vmax.f32 %v1209, 0.0
          %v1274 = vmax.f32 %v1210, 0.0
          %v1275 = vmax.f32 %v1211, 0.0
          %v1276 = vmax.f32 %v1212, 0.0
          %v1277 = vmax.f32 %v1213, 0.0
          %v1278 = vmax.f32 %v1214, 0.0
          %v1279 = vmax.f32 %v1215, 0.0
          %v1280 = vmax.f32 %v1216, 0.0
          %v1281 = vmax.f32 %v1217, 0.0
          %v1282 = vmax.f32 %v1218, 0.0
          %v1283 = vmax.f32 %v1219, 0.0
          %v1284 = vmax.f32 %v1220, 0.0
          %v1285 = vmax.f32 %v1221, 0.0
          %v1286 = vmax.f32 %v1222, 0.0
          %v1287 = vmax.f32 %v1223, 0.0
          %v1288 = vmax.f32 %v1224, 0.0
          %v1289 = vmax.f32 %v1225, 0.0
          %v1290 = vmax.f32 %v1226, 0.0
          %v1291 = vmax.f32 %v1227, 0.0
          %v1292 = vmax.f32 %v1228, 0.0
          %v1293 = vmax.f32 %v1229, 0.0
          %v1294 = vmax.f32 %v1230, 0.0
          %v1295 = vmax.f32 %v1231, 0.0
          %v1296 = vmax.f32 %v1232, 0.0
          %v1297 = vmax.f32 %v1233, 0.0
          %v1298 = vmax.f32 %v1234, 0.0
          %v1299 = vmax.f32 %v1235, 0.0
          %v1300 = vmax.f32 %v1236, 0.0
          %v1301 = vmax.f32 %v1237, 0.0
          %v1302 = vmax.f32 %v1238, 0.0
          %v1303 = vmax.f32 %v1239, 0.0
          %v1304 = vmax.f32 %v1240, 0.0
          %v1305 = vmax.f32 %v1241, 0.0
          %v1306 = vmax.f32 %v1242, 0.0
          %v1307 = vmax.f32 %v1243, 0.0
          %v1308 = vmax.f32 %v1244, 0.0
          %v1309 = vmax.f32 %v1245, 0.0
          %v1310 = vmax.f32 %v1246, 0.0
          %v1311 = vmax.f32 %v1247, 0.0
          %v1312 = vmax.f32 %v1248, 0.0
          %v1313 = vmax.f32 %v1249, 0.0
          %v1314 = vmax.f32 %v1250, 0.0
          %v1315 = vmax.f32 %v1251, 0.0
          %v1316 = vmax.f32 %v1252, 0.0
          %v1317 = vmax.f32 %v1253, 0.0
          %v1318 = vmax.f32 %v1254, 0.0
          %v1319 = vmax.f32 %v1255, 0.0
          %v1320 = vmax.f32 %v1256, 0.0
          %v1321 = vmax.f32 %v1257, 0.0
          %v1322 = vmax.f32 %v1258, 0.0
          %v1323 = vmax.f32 %v1259, 0.0
          %v1324 = vmax.f32 %v1260, 0.0
          %v1325 = vmax.f32 %v1261, 0.0
          %v1326 = vmax.f32 %v1262, 0.0
          %v1327 = vmax.f32 %v1263, 0.0
          %v1328 = vmax.f32 %v1264, 0.0
          %v1329 = vmax.f32 %v1265, 0.0
          %v1330 = vmax.f32 %v1266, 0.0
          %v1331 = vmax.f32 %v1267, 0.0
          %v1332 = vmax.f32 %v1268, 0.0
          %v1333 = vpack.c.bf16 %v1270, %v1269
          %v1334 = vpack.c.bf16 %v1272, %v1271
          %v1335 = vpack.c.bf16 %v1274, %v1273
          %v1336 = vpack.c.bf16 %v1276, %v1275
          %v1337 = vpack.c.bf16 %v1278, %v1277
          %v1338 = vpack.c.bf16 %v1280, %v1279
          %v1339 = vpack.c.bf16 %v1282, %v1281
          %v1340 = vpack.c.bf16 %v1284, %v1283
          %v1341 = vpack.c.bf16 %v1286, %v1285
          %v1342 = vpack.c.bf16 %v1288, %v1287
          %v1343 = vpack.c.bf16 %v1290, %v1289
          %v1344 = vpack.c.bf16 %v1292, %v1291
          %v1345 = vpack.c.bf16 %v1294, %v1293
          %v1346 = vpack.c.bf16 %v1296, %v1295
          %v1347 = vpack.c.bf16 %v1298, %v1297
          %v1348 = vpack.c.bf16 %v1300, %v1299
          %v1349 = vpack.c.bf16 %v1302, %v1301
          %v1350 = vpack.c.bf16 %v1304, %v1303
          %v1351 = vpack.c.bf16 %v1306, %v1305
          %v1352 = vpack.c.bf16 %v1308, %v1307
          %v1353 = vpack.c.bf16 %v1310, %v1309
          %v1354 = vpack.c.bf16 %v1312, %v1311
          %v1355 = vpack.c.bf16 %v1314, %v1313
          %v1356 = vpack.c.bf16 %v1316, %v1315
          %v1357 = vpack.c.bf16 %v1318, %v1317
          %v1358 = vpack.c.bf16 %v1320, %v1319
          %v1359 = vpack.c.bf16 %v1322, %v1321
          %v1360 = vpack.c.bf16 %v1324, %v1323
          %v1361 = vpack.c.bf16 %v1326, %v1325
          %v1362 = vpack.c.bf16 %v1328, %v1327
          %v1363 = vpack.c.bf16 %v1330, %v1329
          %v1364 = vpack.c.bf16 %v1332, %v1331
          %v1397 = vunpack.c.l.b16 %v1333
          %v1398 = vunpack.c.h.b16 %v1333
          %v1399 = vunpack.c.l.b16 %v1334
          %v1400 = vunpack.c.h.b16 %v1334
          %v1401 = vunpack.c.l.b16 %v1335
          %v1402 = vunpack.c.h.b16 %v1335
          %v1403 = vunpack.c.l.b16 %v1336
          %v1404 = vunpack.c.h.b16 %v1336
          %v1405 = vunpack.c.l.b16 %v1337
          %v1406 = vunpack.c.h.b16 %v1337
          %v1407 = vunpack.c.l.b16 %v1338
          %v1408 = vunpack.c.h.b16 %v1338
          %v1409 = vunpack.c.l.b16 %v1339
          %v1410 = vunpack.c.h.b16 %v1339
          %v1411 = vunpack.c.l.b16 %v1340
          %v1412 = vunpack.c.h.b16 %v1340
          %v1413 = vunpack.c.l.b16 %v1341
          %v1414 = vunpack.c.h.b16 %v1341
          %v1415 = vunpack.c.l.b16 %v1342
          %v1416 = vunpack.c.h.b16 %v1342
          %v1417 = vunpack.c.l.b16 %v1343
          %v1418 = vunpack.c.h.b16 %v1343
          %v1419 = vunpack.c.l.b16 %v1344
          %v1420 = vunpack.c.h.b16 %v1344
          %v1421 = vunpack.c.l.b16 %v1345
          %v1422 = vunpack.c.h.b16 %v1345
          %v1423 = vunpack.c.l.b16 %v1346
          %v1424 = vunpack.c.h.b16 %v1346
          %v1425 = vunpack.c.l.b16 %v1347
          %v1426 = vunpack.c.h.b16 %v1347
          %v1427 = vunpack.c.l.b16 %v1348
          %v1428 = vunpack.c.h.b16 %v1348
          %v1429 = vunpack.c.l.b16 %v1349
          %v1430 = vunpack.c.h.b16 %v1349
          %v1431 = vunpack.c.l.b16 %v1350
          %v1432 = vunpack.c.h.b16 %v1350
          %v1433 = vunpack.c.l.b16 %v1351
          %v1434 = vunpack.c.h.b16 %v1351
          %v1435 = vunpack.c.l.b16 %v1352
          %v1436 = vunpack.c.h.b16 %v1352
          %v1437 = vunpack.c.l.b16 %v1353
          %v1438 = vunpack.c.h.b16 %v1353
          %v1439 = vunpack.c.l.b16 %v1354
          %v1440 = vunpack.c.h.b16 %v1354
          %v1441 = vunpack.c.l.b16 %v1355
          %v1442 = vunpack.c.h.b16 %v1355
          %v1443 = vunpack.c.l.b16 %v1356
          %v1444 = vunpack.c.h.b16 %v1356
          %v1445 = vunpack.c.l.b16 %v1357
          %v1446 = vunpack.c.h.b16 %v1357
          %v1447 = vunpack.c.l.b16 %v1358
          %v1448 = vunpack.c.h.b16 %v1358
          %v1449 = vunpack.c.l.b16 %v1359
          %v1450 = vunpack.c.h.b16 %v1359
          %v1451 = vunpack.c.l.b16 %v1360
          %v1452 = vunpack.c.h.b16 %v1360
          %v1453 = vunpack.c.l.b16 %v1361
          %v1454 = vunpack.c.h.b16 %v1361
          %v1455 = vunpack.c.l.b16 %v1362
          %v1456 = vunpack.c.h.b16 %v1362
          %v1457 = vunpack.c.l.b16 %v1363
          %v1458 = vunpack.c.h.b16 %v1363
          %v1459 = vunpack.c.l.b16 %v1364
          %v1460 = vunpack.c.h.b16 %v1364
          %v1461 = vpack.c.b16 %v1397, %v1397
          %v1462 = vpack.c.b16 %v1398, %v1398
          %v1463 = vpack.c.b16 %v1399, %v1399
          %v1464 = vpack.c.b16 %v1400, %v1400
          %v1465 = vpack.c.b16 %v1401, %v1401
          %v1466 = vpack.c.b16 %v1402, %v1402
          %v1467 = vpack.c.b16 %v1403, %v1403
          %v1468 = vpack.c.b16 %v1404, %v1404
          %v1469 = vpack.c.b16 %v1405, %v1405
          %v1470 = vpack.c.b16 %v1406, %v1406
          %v1471 = vpack.c.b16 %v1407, %v1407
          %v1472 = vpack.c.b16 %v1408, %v1408
          %v1473 = vpack.c.b16 %v1409, %v1409
          %v1474 = vpack.c.b16 %v1410, %v1410
          %v1475 = vpack.c.b16 %v1411, %v1411
          %v1476 = vpack.c.b16 %v1412, %v1412
          %v1477 = vpack.c.b16 %v1413, %v1413
          %v1478 = vpack.c.b16 %v1414, %v1414
          %v1479 = vpack.c.b16 %v1415, %v1415
          %v1480 = vpack.c.b16 %v1416, %v1416
          %v1481 = vpack.c.b16 %v1417, %v1417
          %v1482 = vpack.c.b16 %v1418, %v1418
          %v1483 = vpack.c.b16 %v1419, %v1419
          %v1484 = vpack.c.b16 %v1420, %v1420
          %v1485 = vpack.c.b16 %v1421, %v1421
          %v1486 = vpack.c.b16 %v1422, %v1422
          %v1487 = vpack.c.b16 %v1423, %v1423
          %v1488 = vpack.c.b16 %v1424, %v1424
          %v1489 = vpack.c.b16 %v1425, %v1425
          %v1490 = vpack.c.b16 %v1426, %v1426
          %v1491 = vpack.c.b16 %v1427, %v1427
          %v1492 = vpack.c.b16 %v1428, %v1428
          %v1493 = vpack.c.b16 %v1429, %v1429
          %v1494 = vpack.c.b16 %v1430, %v1430
          %v1495 = vpack.c.b16 %v1431, %v1431
          %v1496 = vpack.c.b16 %v1432, %v1432
          %v1497 = vpack.c.b16 %v1433, %v1433
          %v1498 = vpack.c.b16 %v1434, %v1434
          %v1499 = vpack.c.b16 %v1435, %v1435
          %v1500 = vpack.c.b16 %v1436, %v1436
          %v1501 = vpack.c.b16 %v1437, %v1437
          %v1502 = vpack.c.b16 %v1438, %v1438
          %v1503 = vpack.c.b16 %v1439, %v1439
          %v1504 = vpack.c.b16 %v1440, %v1440
          %v1505 = vpack.c.b16 %v1441, %v1441
          %v1506 = vpack.c.b16 %v1442, %v1442
          %v1507 = vpack.c.b16 %v1443, %v1443
          %v1508 = vpack.c.b16 %v1444, %v1444
          %v1509 = vpack.c.b16 %v1445, %v1445
          %v1510 = vpack.c.b16 %v1446, %v1446
          %v1511 = vpack.c.b16 %v1447, %v1447
          %v1512 = vpack.c.b16 %v1448, %v1448
          %v1513 = vpack.c.b16 %v1449, %v1449
          %v1514 = vpack.c.b16 %v1450, %v1450
          %v1515 = vpack.c.b16 %v1451, %v1451
          %v1516 = vpack.c.b16 %v1452, %v1452
          %v1517 = vpack.c.b16 %v1453, %v1453
          %v1518 = vpack.c.b16 %v1454, %v1454
          %v1519 = vpack.c.b16 %v1455, %v1455
          %v1520 = vpack.c.b16 %v1456, %v1456
          %v1521 = vpack.c.b16 %v1457, %v1457
          %v1522 = vpack.c.b16 %v1458, %v1458
          %v1523 = vpack.c.b16 %v1459, %v1459
          %v1524 = vpack.c.b16 %v1460, %v1460
          %1589 = vst [vmem:[%s257] sm:$0xf] %v1461
          %1590 = vst [vmem:[%s257 + $0x4] sm:$0xf] %v1462
          %1591 = vst [vmem:[%s257 + $0x8] sm:$0xf] %v1463
          %1592 = vst [vmem:[%s257 + $0xc] sm:$0xf] %v1464
          %1593 = vst [vmem:[%s257 + $0x10] sm:$0xf] %v1465
          %1594 = vst [vmem:[%s257 + $0x14] sm:$0xf] %v1466
          %1595 = vst [vmem:[%s257 + $0x18] sm:$0xf] %v1467
          %1596 = vst [vmem:[%s257 + $0x1c] sm:$0xf] %v1468
          %1597 = vst [vmem:[%s257 + $0x20] sm:$0xf] %v1469
          %1598 = vst [vmem:[%s257 + $0x24] sm:$0xf] %v1470
          %1599 = vst [vmem:[%s257 + $0x28] sm:$0xf] %v1471
          %1600 = vst [vmem:[%s257 + $0x2c] sm:$0xf] %v1472
          %1601 = vst [vmem:[%s257 + $0x30] sm:$0xf] %v1473
          %1602 = vst [vmem:[%s257 + $0x34] sm:$0xf] %v1474
          %1603 = vst [vmem:[%s257 + $0x38] sm:$0xf] %v1475
          %1604 = vst [vmem:[%s257 + $0x3c] sm:$0xf] %v1476
          %1605 = vst [vmem:[%s257 + $0x40] sm:$0xf] %v1477
          %1606 = vst [vmem:[%s257 + $0x44] sm:$0xf] %v1478
          %1607 = vst [vmem:[%s257 + $0x48] sm:$0xf] %v1479
          %1608 = vst [vmem:[%s257 + $0x4c] sm:$0xf] %v1480
          %1609 = vst [vmem:[%s257 + $0x50] sm:$0xf] %v1481
          %1610 = vst [vmem:[%s257 + $0x54] sm:$0xf] %v1482
          %1611 = vst [vmem:[%s257 + $0x58] sm:$0xf] %v1483
          %1612 = vst [vmem:[%s257 + $0x5c] sm:$0xf] %v1484
          %1613 = vst [vmem:[%s257 + $0x60] sm:$0xf] %v1485
          %1614 = vst [vmem:[%s257 + $0x64] sm:$0xf] %v1486
          %1615 = vst [vmem:[%s257 + $0x68] sm:$0xf] %v1487
          %1616 = vst [vmem:[%s257 + $0x6c] sm:$0xf] %v1488
          %1617 = vst [vmem:[%s257 + $0x70] sm:$0xf] %v1489
          %1618 = vst [vmem:[%s257 + $0x74] sm:$0xf] %v1490
          %1619 = vst [vmem:[%s257 + $0x78] sm:$0xf] %v1491
          %1620 = vst [vmem:[%s257 + $0x7c] sm:$0xf] %v1492
          %1621 = vst [vmem:[%s257 + $0x80] sm:$0xf] %v1493
          %1622 = vst [vmem:[%s257 + $0x84] sm:$0xf] %v1494
          %1623 = vst [vmem:[%s257 + $0x88] sm:$0xf] %v1495
          %1624 = vst [vmem:[%s257 + $0x8c] sm:$0xf] %v1496
          %1625 = vst [vmem:[%s257 + $0x90] sm:$0xf] %v1497
          %1626 = vst [vmem:[%s257 + $0x94] sm:$0xf] %v1498
          %1627 = vst [vmem:[%s257 + $0x98] sm:$0xf] %v1499
          %1628 = vst [vmem:[%s257 + $0x9c] sm:$0xf] %v1500
          %1629 = vst [vmem:[%s257 + $0xa0] sm:$0xf] %v1501
          %1630 = vst [vmem:[%s257 + $0xa4] sm:$0xf] %v1502
          %1631 = vst [vmem:[%s257 + $0xa8] sm:$0xf] %v1503
          %1632 = vst [vmem:[%s257 + $0xac] sm:$0xf] %v1504
          %1633 = vst [vmem:[%s257 + $0xb0] sm:$0xf] %v1505
          %1634 = vst [vmem:[%s257 + $0xb4] sm:$0xf] %v1506
          %1635 = vst [vmem:[%s257 + $0xb8] sm:$0xf] %v1507
          %1636 = vst [vmem:[%s257 + $0xbc] sm:$0xf] %v1508
          %1637 = vst [vmem:[%s257 + $0xc0] sm:$0xf] %v1509
          %1638 = vst [vmem:[%s257 + $0xc4] sm:$0xf] %v1510
          %1639 = vst [vmem:[%s257 + $0xc8] sm:$0xf] %v1511
          %1640 = vst [vmem:[%s257 + $0xcc] sm:$0xf] %v1512
          %1641 = vst [vmem:[%s257 + $0xd0] sm:$0xf] %v1513
          %1642 = vst [vmem:[%s257 + $0xd4] sm:$0xf] %v1514
          %1643 = vst [vmem:[%s257 + $0xd8] sm:$0xf] %v1515
          %1644 = vst [vmem:[%s257 + $0xdc] sm:$0xf] %v1516
          %1645 = vst [vmem:[%s257 + $0xe0] sm:$0xf] %v1517
          %1646 = vst [vmem:[%s257 + $0xe4] sm:$0xf] %v1518
          %1647 = vst [vmem:[%s257 + $0xe8] sm:$0xf] %v1519
          %1648 = vst [vmem:[%s257 + $0xec] sm:$0xf] %v1520
          %1649 = vst [vmem:[%s257 + $0xf0] sm:$0xf] %v1521
          %1650 = vst [vmem:[%s257 + $0xf4] sm:$0xf] %v1522
          %1651 = vst [vmem:[%s257 + $0xf8] sm:$0xf] %v1523
          %1652 = vst [vmem:[%s257 + $0xfc] sm:$0xf] %v1524
        $region52: #{tpu_custom_call.1} parent=31 // pred_fallthru
          _
        %s1653 = sand.u32 %s132, 1
        %s1654 = scalar_lea.sflag [#allocation5], %s1653
        %s1655 = sand.u32 %s132, 1
        %s1656 = smul.addr %s1655, 256
        %s1657 = scalar_lea.vmem [#allocation9], %s1656
        // Predicated region
        $region53: #{tpu_custom_call.1} parent=31 // pred_check
          %p1658 = pneg %p142
        $region54: #{tpu_custom_call.1} parent=31 // pred_check_branch
          %1660 = sbr.rel (%p1658) target = $region56
        $region55: #{tpu_custom_call.1} parent=31 // pred_region
          %s1661 = smul.u32 64, %s26
          %s1663 = ssub.s32 4096, 4096
          %1664 = vsyncadd %s1654, %s1663
          %s1665 = sadd.s32 %s27, %s1661
          %s1666 = smul.addr %s1665, 64
          %s1667 = scalar_lea.hbm %s3, %s1666
          %s1668 = sshll.u32 %s1657, 4
          %s1669 = int_to_ptr.vmem [resolvable:$true] %s1668
          %1674 = dma.vmem_to_hbm [thread:$0]  %s1669, 4096, %s1667, %s1654, 64, 64, 4
        $region56: #{tpu_custom_call.1} parent=31 // pred_fallthru
          _
      $region32: #{tpu_custom_call.1} parent=5 // pred_fallthru
        _
      %p1675 = scmp.le.s32.totalorder 2, %s16
      // Predicated region
      $region57: #{tpu_custom_call.1} parent=5 // pred_check
        %p1676 = pneg %p1675
      $region58: #{tpu_custom_call.1} parent=5 // pred_check_branch
        %1678 = sbr.rel (%p1676) target = $region60
      $region59: #{tpu_custom_call.1} parent=5 // pred_region
        %s1679 = ssub.s32 %s16, 2
        // Predicated region
        $region61: #{tpu_custom_call.1} parent=59 // pred_check
          %p1680 = pneg %p148
        $region62: #{tpu_custom_call.1} parent=59 // pred_check_branch
          %1682 = sbr.rel (%p1680) target = $region64
        $region63: #{tpu_custom_call.1} parent=59 // pred_region
          %s1683 = sand.u32 %s133, 1
          %s1684 = scalar_lea.sflag [#allocation5], %s1683
          %s1685 = sand.u32 %s133, 1
          %s1686 = smul.addr %s1685, 256
          %s1687 = scalar_lea.vmem [#allocation9], %s1686
          %1688 = dma.done %s1684, 4096
        $region64: #{tpu_custom_call.1} parent=59 // pred_fallthru
          _
      $region60: #{tpu_custom_call.1} parent=5 // pred_fallthru
        _
    $region6: #{tpu_custom_call.1} parent=1 // loop_footer
      %s20 = sadd.s32 1, %s16
    $region7: #{tpu_custom_call.1} parent=1 // loop_footer_branch
      %15 = sbr.rel target = $region3
    $region8: #{tpu_custom_call.1} parent=1 // loop_exit
      _
    %1689 = vsyncpa [#allocation4], 1
    %s1690 = scalar_lea.sflag [#allocation4], 1
    %1691 = vsyncpa %s1690, 1
    %1692 = vsyncpa [#allocation7], 1
    %1693 = vsyncpa [#allocation5], 1
    %s1694 = scalar_lea.sflag [#allocation5], 1
    %1695 = vsyncpa %s1694, 1

</llo_original>
